<compile_context>
chip_gen: v7x
topology: tpu7x:2x2x1
jax: 0.10.0
libtpu: 0.0.40
codegen_flags: <defaults>
</compile_context>

<pallas_src>
import jax
import jax.numpy as jnp
from jax.experimental import pallas as pl
from jax.experimental.pallas import tpu as pltpu

# ---- hyper-params chosen for the Conv2d **kwargs -----------------------------
KH, KW = 3, 3
STRIDE = 1
PAD = 1
BN_EPS = 0.01

LANE = 128            # pad K and Cout to multiples of this
SUB = 8               # f32 sublanes per vreg (partial-sum accumulator rows)
TILE_M_MAX = 512      # output-pixel rows per grid step (multiple of 16 for bf16)
STATS_CORES = 2       # leading "parallel" axis of the stats pass (megacore on v7x)


def _round_up(x, m):
    return (x + m - 1) // m * m


def _cdiv(a, b):
    return -(-a // b)


# ---------------------------- Pallas kernels ----------------------------------
def _stats_kernel(p_ref, w_ref, sum_ref, ssq_ref):
    """Phase 1: tiled matmul; accumulate per-core per-channel sum / sum-of-squares."""
    @pl.when(pl.program_id(1) == 0)
    def _():
        sum_ref[...] = jnp.zeros_like(sum_ref)
        ssq_ref[...] = jnp.zeros_like(ssq_ref)

    conv = jnp.dot(p_ref[...], w_ref[...],
                   preferred_element_type=jnp.float32)           # (tm, Cp) f32
    tm, cp = conv.shape
    # Sublane-partial (8, Cp) accumulation; the host finishes the reduction.
    part = conv.reshape(tm // SUB, SUB, cp)
    sum_ref[...] += jnp.sum(part, axis=0)[None]
    ssq_ref[...] += jnp.sum(part * part, axis=0)[None]


def _apply_kernel(p_ref, w_ref, scale_ref, shift_ref, o_ref):
    """Phase 2: recompute conv tile, apply folded BN (scale/shift) + ReLU, store bf16."""
    conv = jnp.dot(p_ref[...], w_ref[...],
                   preferred_element_type=jnp.float32)           # (tm, Cp) f32
    y = conv * scale_ref[...] + shift_ref[...]
    o_ref[...] = jnp.maximum(y, 0.0).astype(o_ref.dtype)         # cast only at the store


def _conv_stats(patches, w_mat, tm, vmem_limit):
    Mp, Kp = patches.shape
    _, Cp = w_mat.shape
    nblk = Mp // (STATS_CORES * tm)                              # blocks per core
    sums, ssqs = pl.pallas_call(
        _stats_kernel,
        out_shape=(jax.ShapeDtypeStruct((STATS_CORES, SUB, Cp), jnp.float32),
                   jax.ShapeDtypeStruct((STATS_CORES, SUB, Cp), jnp.float32)),
        grid_spec=pltpu.PrefetchScalarGridSpec(
            num_scalar_prefetch=0,
            grid=(STATS_CORES, nblk),
            in_specs=[
                pl.BlockSpec((tm, Kp), lambda c, i: (c * nblk + i, 0)),
                pl.BlockSpec((Kp, Cp), lambda c, i: (0, 0)),     # weights resident
            ],
            out_specs=(pl.BlockSpec((1, SUB, Cp), lambda c, i: (c, 0, 0)),
                       pl.BlockSpec((1, SUB, Cp), lambda c, i: (c, 0, 0))),
        ),
        compiler_params=pltpu.CompilerParams(
            dimension_semantics=("parallel", "arbitrary"),       # M split across TCs
            vmem_limit_bytes=vmem_limit),
    )(patches, w_mat)
    # finish reduction on host: (STATS_CORES, SUB, Cp) -> (1, Cp)
    s = jnp.sum(sums, axis=(0, 1))[None]
    ssq = jnp.sum(ssqs, axis=(0, 1))[None]
    return s, ssq


def _conv_apply(patches, w_mat, scale, shift, tm, vmem_limit):
    Mp, Kp = patches.shape
    _, Cp = w_mat.shape
    return pl.pallas_call(
        _apply_kernel,
        out_shape=jax.ShapeDtypeStruct((Mp, Cp), jnp.bfloat16),  # bf16 stores: half HBM write
        grid_spec=pltpu.PrefetchScalarGridSpec(
            num_scalar_prefetch=0,
            grid=(Mp // tm,),
            in_specs=[
                pl.BlockSpec((tm, Kp), lambda i: (i, 0)),
                pl.BlockSpec((Kp, Cp), lambda i: (0, 0)),        # resident
                pl.BlockSpec((1, Cp), lambda i: (0, 0)),         # resident
                pl.BlockSpec((1, Cp), lambda i: (0, 0)),         # resident
            ],
            out_specs=pl.BlockSpec((tm, Cp), lambda i: (i, 0)),  # lane-dense stores
        ),
        compiler_params=pltpu.CompilerParams(
            dimension_semantics=("parallel",),                   # megacore on v7x
            vmem_limit_bytes=vmem_limit),
    )(patches, w_mat, scale, shift)


# ------------------------------ glue (plain JAX) ------------------------------
def _im2col_bf16(x_nchw, kh, kw, pad, stride):
    """im2col directly in bf16 (no f32 intermediate)."""
    N, C, H, W = x_nchw.shape
    xp = jnp.pad(x_nchw.astype(jnp.bfloat16),
                 ((0, 0), (0, 0), (pad, pad), (pad, pad)))
    Ho = (H + 2 * pad - kh) // stride + 1
    Wo = (W + 2 * pad - kw) // stride + 1
    cols = []
    for i in range(kh):
        for j in range(kw):
            cols.append(xp[:, :, i:i + stride * Ho:stride,
                           j:j + stride * Wo:stride])            # (N,C,Ho,Wo)
    p = jnp.stack(cols, axis=2)                                  # (N,C,kh*kw,Ho,Wo)
    p = p.transpose(0, 3, 4, 1, 2).reshape(N * Ho * Wo, C * kh * kw)
    return p, Ho, Wo


@jax.jit
def basic_conv_block(x, weight, gamma, beta):
    """x: (N, Cin, H, W) NCHW; weight: (Cout, Cin, KH, KW); gamma/beta: (Cout,)."""
    N, Cin, H, W = x.shape
    Cout = weight.shape[0]
    K = Cin * KH * KW

    patches, Ho, Wo = _im2col_bf16(x, KH, KW, PAD, STRIDE)       # (M, K) bf16
    M = N * Ho * Wo

    # Lane-dense zero-padding of K / Cout to 128; pad M to a multiple of
    # STATS_CORES * tm so both passes tile evenly (padded rows are all-zero).
    Kp = _round_up(K, LANE)
    Cp = _round_up(Cout, LANE)
    tm = min(TILE_M_MAX, _round_up(_cdiv(M, STATS_CORES), 16))
    Mp = _round_up(M, STATS_CORES * tm)

    patches_p = jnp.zeros((Mp, Kp), jnp.bfloat16).at[:M, :K].set(patches)
    w_mat = weight.reshape(Cout, K).T.astype(jnp.bfloat16)       # (K, Cout)
    w_p = jnp.zeros((Kp, Cp), jnp.bfloat16).at[:K, :Cout].set(w_mat)

    # Per-step VMEM footprint (double-buffered patch/output tiles, resident weights,
    # f32 conv temporaries); derive the scoped limit from it instead of a flat 48 MiB
    # so it stays well inside v7x's 64 MiB per-TC VMEM.
    footprint = (2 * tm * Kp * 2      # patch tiles (bf16, 2 buffers)
                 + 2 * Kp * Cp * 2    # weights (bf16, default double-buffer)
                 + 2 * tm * Cp * 2    # bf16 output tiles (2 buffers)
                 + 2 * tm * Cp * 4)   # f32 matmul result / temporaries
    vmem_limit = int(min(max(8 * footprint, 16 << 20), 32 << 20))

    # Phase 1: global per-channel statistics over all real rows (padded rows are
    # all-zero patches -> conv rows of 0 -> contribute nothing to sum / sumsq).
    s, ssq = _conv_stats(patches_p, w_p, tm, vmem_limit)

    # Fold BatchNorm (batch mean, biased variance) into per-channel scale / shift.
    mean = s / M
    var = jnp.maximum(ssq / M - mean * mean, 0.0)
    gamma_p = jnp.zeros((1, Cp), jnp.float32).at[0, :Cout].set(gamma.astype(jnp.float32))
    beta_p = jnp.zeros((1, Cp), jnp.float32).at[0, :Cout].set(beta.astype(jnp.float32))
    scale = gamma_p * jax.lax.rsqrt(var + BN_EPS)
    shift = beta_p - mean * scale

    # Phase 2: tiled conv + y = max(conv*scale + shift, 0), stored as bf16.
    out_mat = _conv_apply(patches_p, w_p, scale, shift, tm, vmem_limit)  # (Mp, Cp) bf16

    out = out_mat[:M, :Cout].reshape(N, Ho, Wo, Cout).transpose(0, 3, 1, 2)
    return out.astype(x.dtype)   # match the module's dtype on the small real output


# ------------------------------ reference ------------------------------------
def _reference(x, weight, gamma, beta):
    conv = jax.lax.conv_general_dilated(
        x.astype(jnp.float32), weight.astype(jnp.float32),
        window_strides=(STRIDE, STRIDE),
        padding=((PAD, PAD), (PAD, PAD)),
        dimension_numbers=("NCHW", "OIHW", "NCHW"))
    mean = jnp.mean(conv, axis=(0, 2, 3), keepdims=True)
    var = jnp.mean((conv - mean) ** 2, axis=(0, 2, 3), keepdims=True)
    y = (conv - mean) * jax.lax.rsqrt(var + BN_EPS)
    y = y * gamma.reshape(1, -1, 1, 1) + beta.reshape(1, -1, 1, 1)
    return jnp.maximum(y, 0.0)


# --------------------------------- main ---------------------------------------
if __name__ == "__main__":
    N, Cin, H, W = 2, 4, 16, 16
    Cout = 8

    key = jax.random.PRNGKey(0)
    kx, kw_ = jax.random.split(key)
    x = jax.random.normal(kx, (N, Cin, H, W), dtype=jnp.float32)
    # deterministic "kaiming-ish" conv weight init (no checkpoint load)
    fan_in = Cin * KH * KW
    weight = jax.random.normal(kw_, (Cout, Cin, KH, KW), dtype=jnp.float32)
    weight = weight * (2.0 / fan_in) ** 0.5
    gamma = jnp.ones((Cout,), jnp.float32)   # nn.BatchNorm2d default affine init
    beta = jnp.zeros((Cout,), jnp.float32)

    out = jax.block_until_ready(basic_conv_block(x, weight, gamma, beta))
    ref = jax.block_until_ready(_reference(x, weight, gamma, beta))

    assert out.shape == (N, Cout, H, W), out.shape
    # Tolerance loosened vs. pure-f32: bf16 MXU inputs (f32 accumulate) + bf16 store;
    # observed error is O(1e-3) on unit-variance outputs.
    max_err = float(jnp.max(jnp.abs(out - ref)))
    assert jnp.allclose(out, ref, atol=3e-2, rtol=3e-2), max_err

    print("KERNEL_OK")
</pallas_src>

<mosaic_0001>
module attributes {stable_mosaic.version = 11 : i64} {
  func.func @_stats_kernel(%arg0: i32, %arg1: i32, %arg2: memref<256x128xbf16, #tpu.memory_space<vmem>>, %arg3: memref<128x128xbf16, #tpu.memory_space<vmem>>, %arg4: memref<1x8x128xf32, #tpu.memory_space<vmem>>, %arg5: memref<1x8x128xf32, #tpu.memory_space<vmem>>) attributes {dimension_semantics = [#tpu.dimension_semantics<parallel>, #tpu.dimension_semantics<arbitrary>], iteration_bounds = array<i64: 2, 1>, scalar_prefetch = 0 : i64, scratch_operands = 0 : i64, tpu.core_type = #tpu.core_type<tc>, window_params = [{transform_indices = @transform_0, window_bounds = array<i64: 256, 128>}, {pipeline_mode = #tpu.pipeline_mode<synchronous>, transform_indices = @transform_1, window_bounds = array<i64: 128, 128>}, {transform_indices = @transform_2, window_bounds = array<i64: 1, 8, 128>}, {transform_indices = @transform_3, window_bounds = array<i64: 1, 8, 128>}]} {
    %c0_i32 = arith.constant 0 : i32
    %0 = arith.cmpi eq, %arg1, %c0_i32 : i32
    %1 = arith.extui %0 : i1 to i32
    %c0_i32_0 = arith.constant 0 : i32
    %2 = arith.cmpi ne, %1, %c0_i32_0 : i32
    scf.if %2 {
      %cst_18 = arith.constant 0.000000e+00 : f32
      %18 = vector.broadcast %cst_18 : f32 to vector<1x8x128xf32>
      %c0_19 = arith.constant 0 : index
      %c0_20 = arith.constant 0 : index
      %c0_21 = arith.constant 0 : index
      %19 = vector.load %arg4[%c0_19, %c0_20, %c0_21] : memref<1x8x128xf32, #tpu.memory_space<vmem>>, vector<1x8x128xf32>
      tpu.vector_store %arg4[%c0_19, %c0_20, %c0_21], %18 {strides = array<i32>} : memref<1x8x128xf32, #tpu.memory_space<vmem>>, vector<1x8x128xf32>,
      %cst_22 = arith.constant 0.000000e+00 : f32
      %20 = vector.broadcast %cst_22 : f32 to vector<1x8x128xf32>
      %c0_23 = arith.constant 0 : index
      %c0_24 = arith.constant 0 : index
      %c0_25 = arith.constant 0 : index
      %21 = vector.load %arg5[%c0_23, %c0_24, %c0_25] : memref<1x8x128xf32, #tpu.memory_space<vmem>>, vector<1x8x128xf32>
      tpu.vector_store %arg5[%c0_23, %c0_24, %c0_25], %20 {strides = array<i32>} : memref<1x8x128xf32, #tpu.memory_space<vmem>>, vector<1x8x128xf32>,
    } else {
    }
    %c0 = arith.constant 0 : index
    %c0_1 = arith.constant 0 : index
    %3 = vector.load %arg2[%c0, %c0_1] : memref<256x128xbf16, #tpu.memory_space<vmem>>, vector<256x128xbf16>
    %c0_2 = arith.constant 0 : index
    %c0_3 = arith.constant 0 : index
    %4 = vector.load %arg3[%c0_2, %c0_3] : memref<128x128xbf16, #tpu.memory_space<vmem>>, vector<128x128xbf16>
    %cst = arith.constant dense<0.000000e+00> : vector<256x128xf32>
    %5 = tpu.matmul %3, %4, %cst {dimension_numbers = #tpu.dot_dimension_numbers<[1], [0], [0], [1], [0, 0, 1, 1], [], []>} : vector<256x128xbf16>, vector<128x128xbf16>, vector<256x128xf32> -> vector<256x128xf32>
    %6 = vector.shape_cast %5 : vector<256x128xf32> to vector<32x8x128xf32>
    %c0_4 = arith.constant 0 : index
    %c0_5 = arith.constant 0 : index
    %c0_6 = arith.constant 0 : index
    %7 = vector.load %arg4[%c0_4, %c0_5, %c0_6] : memref<1x8x128xf32, #tpu.memory_space<vmem>>, vector<1x8x128xf32>
    %cst_7 = arith.constant dense<0.000000e+00> : vector<8x128xf32>
    %8 = vector.multi_reduction <add>, %6, %cst_7 [0] : vector<32x8x128xf32> to vector<8x128xf32>
    %9 = vector.shape_cast %8 : vector<8x128xf32> to vector<1x8x128xf32>
    %10 = arith.addf %7, %9 : vector<1x8x128xf32>
    %c0_8 = arith.constant 0 : index
    %c0_9 = arith.constant 0 : index
    %c0_10 = arith.constant 0 : index
    %11 = vector.load %arg4[%c0_8, %c0_9, %c0_10] : memref<1x8x128xf32, #tpu.memory_space<vmem>>, vector<1x8x128xf32>
    tpu.vector_store %arg4[%c0_8, %c0_9, %c0_10], %10 {strides = array<i32>} : memref<1x8x128xf32, #tpu.memory_space<vmem>>, vector<1x8x128xf32>,
    %c0_11 = arith.constant 0 : index
    %c0_12 = arith.constant 0 : index
    %c0_13 = arith.constant 0 : index
    %12 = vector.load %arg5[%c0_11, %c0_12, %c0_13] : memref<1x8x128xf32, #tpu.memory_space<vmem>>, vector<1x8x128xf32>
    %13 = arith.mulf %6, %6 : vector<32x8x128xf32>
    %cst_14 = arith.constant dense<0.000000e+00> : vector<8x128xf32>
    %14 = vector.multi_reduction <add>, %13, %cst_14 [0] : vector<32x8x128xf32> to vector<8x128xf32>
    %15 = vector.shape_cast %14 : vector<8x128xf32> to vector<1x8x128xf32>
    %16 = arith.addf %12, %15 : vector<1x8x128xf32>
    %c0_15 = arith.constant 0 : index
    %c0_16 = arith.constant 0 : index
    %c0_17 = arith.constant 0 : index
    %17 = vector.load %arg5[%c0_15, %c0_16, %c0_17] : memref<1x8x128xf32, #tpu.memory_space<vmem>>, vector<1x8x128xf32>
    tpu.vector_store %arg5[%c0_15, %c0_16, %c0_17], %16 {strides = array<i32>} : memref<1x8x128xf32, #tpu.memory_space<vmem>>, vector<1x8x128xf32>,
    return
  }
  func.func @transform_0(%arg0: i32, %arg1: i32) -> (i32, i32) {
    %c1_i32 = arith.constant 1 : i32
    %0 = arith.muli %arg0, %c1_i32 : i32
    %1 = arith.addi %0, %arg1 : i32
    %c0_i32 = arith.constant 0 : i32
    %c0_i32_0 = arith.constant 0 : i32
    return %1, %c0_i32 : i32, i32
  }
  func.func @transform_1(%arg0: i32, %arg1: i32) -> (i32, i32) {
    %c0_i32 = arith.constant 0 : i32
    %c0_i32_0 = arith.constant 0 : i32
    %c0_i32_1 = arith.constant 0 : i32
    return %c0_i32, %c0_i32_0 : i32, i32
  }
  func.func @transform_2(%arg0: i32, %arg1: i32) -> (i32, i32, i32) {
    %c0_i32 = arith.constant 0 : i32
    %c0_i32_0 = arith.constant 0 : i32
    %c0_i32_1 = arith.constant 0 : i32
    return %arg0, %c0_i32, %c0_i32_0 : i32, i32, i32
  }
  func.func @transform_3(%arg0: i32, %arg1: i32) -> (i32, i32, i32) {
    %c0_i32 = arith.constant 0 : i32
    %c0_i32_0 = arith.constant 0 : i32
    %c0_i32_1 = arith.constant 0 : i32
    return %arg0, %c0_i32, %c0_i32_0 : i32, i32, i32
  }
}

module attributes {stable_mosaic.version = 11 : i64} {
  func.func @_apply_kernel(%arg0: i32, %arg1: memref<256x128xbf16, #tpu.memory_space<vmem>>, %arg2: memref<128x128xbf16, #tpu.memory_space<vmem>>, %arg3: memref<1x128xf32, #tpu.memory_space<vmem>>, %arg4: memref<1x128xf32, #tpu.memory_space<vmem>>, %arg5: memref<256x128xbf16, #tpu.memory_space<vmem>>) attributes {dimension_semantics = [#tpu.dimension_semantics<parallel>], iteration_bounds = array<i64: 2>, scalar_prefetch = 0 : i64, scratch_operands = 0 : i64, tpu.core_type = #tpu.core_type<tc>, window_params = [{transform_indices = @transform_0, window_bounds = array<i64: 256, 128>}, {pipeline_mode = #tpu.pipeline_mode<synchronous>, transform_indices = @transform_1, window_bounds = array<i64: 128, 128>}, {pipeline_mode = #tpu.pipeline_mode<synchronous>, transform_indices = @transform_2, window_bounds = array<i64: 1, 128>}, {pipeline_mode = #tpu.pipeline_mode<synchronous>, transform_indices = @transform_3, window_bounds = array<i64: 1, 128>}, {transform_indices = @transform_4, window_bounds = array<i64: 256, 128>}]} {
    %c0 = arith.constant 0 : index
    %c0_0 = arith.constant 0 : index
    %0 = vector.load %arg1[%c0, %c0_0] : memref<256x128xbf16, #tpu.memory_space<vmem>>, vector<256x128xbf16>
    %c0_1 = arith.constant 0 : index
    %c0_2 = arith.constant 0 : index
    %1 = vector.load %arg2[%c0_1, %c0_2] : memref<128x128xbf16, #tpu.memory_space<vmem>>, vector<128x128xbf16>
    %cst = arith.constant dense<0.000000e+00> : vector<256x128xf32>
    %2 = tpu.matmul %0, %1, %cst {dimension_numbers = #tpu.dot_dimension_numbers<[1], [0], [0], [1], [0, 0, 1, 1], [], []>} : vector<256x128xbf16>, vector<128x128xbf16>, vector<256x128xf32> -> vector<256x128xf32>
    %c0_3 = arith.constant 0 : index
    %c0_4 = arith.constant 0 : index
    %3 = vector.load %arg3[%c0_3, %c0_4] : memref<1x128xf32, #tpu.memory_space<vmem>>, vector<1x128xf32>
    %4 = vector.broadcast %3 : vector<1x128xf32> to vector<256x128xf32>
    %5 = arith.mulf %2, %4 : vector<256x128xf32>
    %c0_5 = arith.constant 0 : index
    %c0_6 = arith.constant 0 : index
    %6 = vector.load %arg4[%c0_5, %c0_6] : memref<1x128xf32, #tpu.memory_space<vmem>>, vector<1x128xf32>
    %7 = vector.broadcast %6 : vector<1x128xf32> to vector<256x128xf32>
    %8 = arith.addf %5, %7 : vector<256x128xf32>
    %cst_7 = arith.constant 0.000000e+00 : f32
    %9 = vector.broadcast %cst_7 : f32 to vector<256x128xf32>
    %10 = arith.maximumf %8, %9 : vector<256x128xf32>
    %11 = arith.truncf %10 : vector<256x128xf32> to vector<256x128xbf16>
    %c0_8 = arith.constant 0 : index
    %c0_9 = arith.constant 0 : index
    %12 = vector.load %arg5[%c0_8, %c0_9] : memref<256x128xbf16, #tpu.memory_space<vmem>>, vector<256x128xbf16>
    tpu.vector_store %arg5[%c0_8, %c0_9], %11 {strides = array<i32>} : memref<256x128xbf16, #tpu.memory_space<vmem>>, vector<256x128xbf16>,
    return
  }
  func.func @transform_0(%arg0: i32) -> (i32, i32) {
    %c0_i32 = arith.constant 0 : i32
    %c0_i32_0 = arith.constant 0 : i32
    return %arg0, %c0_i32 : i32, i32
  }
  func.func @transform_1(%arg0: i32) -> (i32, i32) {
    %c0_i32 = arith.constant 0 : i32
    %c0_i32_0 = arith.constant 0 : i32
    %c0_i32_1 = arith.constant 0 : i32
    return %c0_i32, %c0_i32_0 : i32, i32
  }
  func.func @transform_2(%arg0: i32) -> (i32, i32) {
    %c0_i32 = arith.constant 0 : i32
    %c0_i32_0 = arith.constant 0 : i32
    %c0_i32_1 = arith.constant 0 : i32
    return %c0_i32, %c0_i32_0 : i32, i32
  }
  func.func @transform_3(%arg0: i32) -> (i32, i32) {
    %c0_i32 = arith.constant 0 : i32
    %c0_i32_0 = arith.constant 0 : i32
    %c0_i32_1 = arith.constant 0 : i32
    return %c0_i32, %c0_i32_0 : i32, i32
  }
  func.func @transform_4(%arg0: i32) -> (i32, i32) {
    %c0_i32 = arith.constant 0 : i32
    %c0_i32_0 = arith.constant 0 : i32
    return %arg0, %c0_i32 : i32, i32
  }
}

</mosaic_0001>

<llo_original>
// kernel: basic_conv_block.2
$region0: #{basic_conv_block.2}
  #allocation0 [shape = 'u32[]', space=smem, size = 0x4, offset = 0x4, fixed_abs, tag = 'smem constant byte address 0x4 - core index']
  #allocation1 [shape = 'u32[144,128]{1,0:T(1,128)}', space=vmem, size = 0x12000, scoped, tag = 'internal scratch']
  %s0 = inlined_call_operand.vmem [shape: bf16[512,128], index: 0, kind: input, shape index: {}]
  %s1 = inlined_call_operand.vmem [shape: bf16[128,128], index: 1, kind: input, shape index: {}]
  %s2 = inlined_call_operand.vmem [shape: f32[2,8,128], index: 2, kind: output, shape index: {0}]
  %s3 = inlined_call_operand.vmem [shape: f32[2,8,128], index: 3, kind: output, shape index: {1}]
  %4 = xla_tuple %s2, %s3
  %s5 = sld [smem:[#allocation0]]
  $region53: #{basic_conv_block.2} parent=0
    _
  %s7 = ssub.s32 1, %s5
  %s8 = scalar_select 0, %s7, %s5
  loop: start=0, step=1, limit=4
  $region2: #{basic_conv_block.2} parent=0 // loop_pre_header
    _
  $region3: #{basic_conv_block.2} parent=0 // loop_header
    %s10 = sphi 0, %s14
    %p11 = scmp.ge.s32.totalorder %s10, 4
    %s17 = sphi 0, %s29
    %s18 = sphi 0, %s25
    %s19 = sphi 0, %s17
    %s20 = sphi 0, %s18
    %s21 = sphi 0, %s19
    %s22 = sphi 0, %s20
    %s34 = sphi 0, %s36
    %s37 = sphi 0, %s34
    %s38 = sphi 0, %s37
    %s54 = sphi 0, %s38
    %s58 = sphi 0, %s58
    %s60 = sphi 0, %s58
    %s61 = sphi 0, %s60
    %s75 = sphi 0, %s61
    %s81 = sphi 0, %s83
    %s84 = sphi 0, %s81
    %s85 = sphi 0, %s84
    %s101 = sphi 0, %s85
    %s107 = sphi 0, %s109
    %s110 = sphi 0, %s107
    %s111 = sphi 0, %s110
    %s127 = sphi 0, %s111
  $region4: #{basic_conv_block.2} parent=0 // loop_header_branch
    %13 = sbr.rel (%p11) target = $region8
  $region5: #{basic_conv_block.2} parent=0 // loop_body
    %s15 = ssub.s32 %s10, 1
    %s16 = ssub.s32 %s10, 2
    %s23 = sadd.s32 1, %s18
    %p24 = scmp.ge.s32.totalorder %s23, 1
    %s25 = scalar_select %p24, 0, %s23
    %s26 = sadd.s32 1, %s17
    %s27 = scalar_select %p24, %s26, %s17
    %p28 = scmp.ge.s32.totalorder %s27, 2
    %s29 = scalar_select %p28, 0, %s27
    %s30 = sadd.s32 %s17, %s18
    %s31 = sadd.s32 %s29, %s25
    %s32 = ssub.s32 %s30, %s31
    %p33 = scmp.eq.s32.totalorder %s32, 0
    %s35 = sadd.s32 %s34, 1
    %s36 = scalar_select %p33, %s34, %s35
    %p39 = pneg %p33
    %p40 = scmp.eq.s32.totalorder %s10, 1
    %p41 = por %p39, %p40
    %p42 = scmp.ne.s32.totalorder %s34, %s37
    %p43 = scmp.eq.s32.totalorder %s10, 0
    %p44 = por %p42, %p43
    %p45 = scmp.ne.s32.totalorder %s34, %s37
    %p46 = scmp.eq.s32.totalorder %s15, 1
    %p47 = por %p45, %p46
    %p48 = scmp.ne.s32.totalorder %s37, %s38
    %p49 = scmp.eq.s32.totalorder %s15, 0
    %p50 = por %p48, %p49
    %p51 = scmp.ne.s32.totalorder %s37, %s38
    %p52 = scmp.eq.s32.totalorder %s16, 1
    %p53 = por %p51, %p52
    %p55 = scmp.ne.s32.totalorder %s38, %s54
    %p56 = scmp.eq.s32.totalorder %s16, 0
    %p57 = por %p55, %p56
    %s59 = sadd.s32 %s58, 1
    %p62 = scmp.eq.s32.totalorder %s10, 1
    %p63 = scmp.ne.s32.totalorder %s58, %s60
    %p64 = scmp.eq.s32.totalorder %s10, 0
    %p65 = por %p63, %p64
    %p66 = scmp.ne.s32.totalorder %s58, %s60
    %p67 = scmp.eq.s32.totalorder %s15, 1
    %p68 = por %p66, %p67
    %p69 = scmp.ne.s32.totalorder %s60, %s61
    %p70 = scmp.eq.s32.totalorder %s15, 0
    %p71 = por %p69, %p70
    %p72 = scmp.ne.s32.totalorder %s60, %s61
    %p73 = scmp.eq.s32.totalorder %s16, 1
    %p74 = por %p72, %p73
    %p76 = scmp.ne.s32.totalorder %s61, %s75
    %p77 = scmp.eq.s32.totalorder %s16, 0
    %p78 = por %p76, %p77
    %s79 = ssub.s32 %s17, %s29
    %p80 = scmp.eq.s32.totalorder %s79, 0
    %s82 = sadd.s32 %s81, 1
    %s83 = scalar_select %p80, %s81, %s82
    %p86 = pneg %p80
    %p87 = scmp.eq.s32.totalorder %s10, 1
    %p88 = por %p86, %p87
    %p89 = scmp.ne.s32.totalorder %s81, %s84
    %p90 = scmp.eq.s32.totalorder %s10, 0
    %p91 = por %p89, %p90
    %p92 = scmp.ne.s32.totalorder %s81, %s84
    %p93 = scmp.eq.s32.totalorder %s15, 1
    %p94 = por %p92, %p93
    %p95 = scmp.ne.s32.totalorder %s84, %s85
    %p96 = scmp.eq.s32.totalorder %s15, 0
    %p97 = por %p95, %p96
    %p98 = scmp.ne.s32.totalorder %s84, %s85
    %p99 = scmp.eq.s32.totalorder %s16, 1
    %p100 = por %p98, %p99
    %p102 = scmp.ne.s32.totalorder %s85, %s101
    %p103 = scmp.eq.s32.totalorder %s16, 0
    %p104 = por %p102, %p103
    %s105 = ssub.s32 %s17, %s29
    %p106 = scmp.eq.s32.totalorder %s105, 0
    %s108 = sadd.s32 %s107, 1
    %s109 = scalar_select %p106, %s107, %s108
    %p112 = pneg %p106
    %p113 = scmp.eq.s32.totalorder %s10, 1
    %p114 = por %p112, %p113
    %p115 = scmp.ne.s32.totalorder %s107, %s110
    %p116 = scmp.eq.s32.totalorder %s10, 0
    %p117 = por %p115, %p116
    %p118 = scmp.ne.s32.totalorder %s107, %s110
    %p119 = scmp.eq.s32.totalorder %s15, 1
    %p120 = por %p118, %p119
    %p121 = scmp.ne.s32.totalorder %s110, %s111
    %p122 = scmp.eq.s32.totalorder %s15, 0
    %p123 = por %p121, %p122
    %p124 = scmp.ne.s32.totalorder %s110, %s111
    %p125 = scmp.eq.s32.totalorder %s16, 1
    %p126 = por %p124, %p125
    %p128 = scmp.ne.s32.totalorder %s111, %s127
    %p129 = scmp.eq.s32.totalorder %s16, 0
    %p130 = por %p128, %p129
    %p131 = scmp.le.s32.totalorder 1, %s10
    %p132 = scmp.lt.s32.totalorder %s10, 3
    %p133 = pnand %p131, %p132
    %p134 = pneg %p133
    // Predicated region
    $region9: #{basic_conv_block.2} parent=5 // pred_check
      _
    $region10: #{basic_conv_block.2} parent=5 // pred_check_branch
      %136 = sbr.rel (%p133) target = $region12
    $region11: #{basic_conv_block.2} parent=5 // pred_region
      %s137 = ssub.s32 %s10, 1
      // Predicated region
      $region13: #{basic_conv_block.2} parent=11 // pred_check
        %p138 = pneg %p71
      $region14: #{basic_conv_block.2} parent=11 // pred_check_branch
        %140 = sbr.rel (%p138) target = $region16
      $region15: #{basic_conv_block.2} parent=11 // pred_region
        _
      $region16: #{basic_conv_block.2} parent=11 // pred_fallthru
        _
    $region12: #{basic_conv_block.2} parent=5 // pred_fallthru
      _
    %p141 = scmp.lt.s32.totalorder %s10, 2
    // Predicated region
    $region17: #{basic_conv_block.2} parent=5 // pred_check
      %p142 = pneg %p141
    $region18: #{basic_conv_block.2} parent=5 // pred_check_branch
      %144 = sbr.rel (%p142) target = $region20
    $region19: #{basic_conv_block.2} parent=5 // pred_region
      // Predicated region
      $region21: #{basic_conv_block.2} parent=19 // pred_check
        %p145 = pneg %p44
      $region22: #{basic_conv_block.2} parent=19 // pred_check_branch
        %147 = sbr.rel (%p145) target = $region24
      $region23: #{basic_conv_block.2} parent=19 // pred_region
        %s148 = sadd.s32 %s17, %s18
        %s149 = smul.u32 32, %s148
        %p150 = scmp.lt.s32.totalorder %s149, 63
        %s151 = scalar_select %p150, %s149, 63
        %s152 = smul.addr %s151, 4
        %s153 = scalar_lea.vmem %s0, %s152
        %s154 = sadd.s32 %s17, %s18
        %s155 = smul.u32 32, %s154
      $region24: #{basic_conv_block.2} parent=19 // pred_fallthru
        _
    $region20: #{basic_conv_block.2} parent=5 // pred_fallthru
      _
    %p156 = scmp.le.s32.totalorder 1, %s10
    %p157 = scmp.lt.s32.totalorder %s10, 3
    %p158 = pnand %p156, %p157
    %p159 = pneg %p158
    // Predicated region
    $region25: #{basic_conv_block.2} parent=5 // pred_check
      _
    $region26: #{basic_conv_block.2} parent=5 // pred_check_branch
      %161 = sbr.rel (%p158) target = $region28
    $region27: #{basic_conv_block.2} parent=5 // pred_region
      %s162 = ssub.s32 %s10, 1
      %s163 = sadd.s32 %s19, %s20
      %s164 = smul.u32 32, %s163
      %p165 = scmp.lt.s32.totalorder %s164, 63
      %s166 = scalar_select %p165, %s164, 63
      %s167 = smul.addr %s166, 4
      %s168 = scalar_lea.vmem %s0, %s167
      %p169 = pneg %p50
      %p170 = pneg %p47
      %p171 = pneg %p71
      %p172 = pneg %p68
      %p173 = pneg %p97
      %p174 = pneg %p94
      %p175 = scmp.lt.s32.totalorder %s19, 1
      %s176 = scalar_select %p175, %s19, 1
      %s177 = smul.addr %s176, 8
      %s178 = scalar_lea.vmem %s2, %s177
      %p179 = pneg %p123
      %p180 = pneg %p120
      %p181 = scmp.lt.s32.totalorder %s19, 1
      %s182 = scalar_select %p181, %s19, 1
      %s183 = smul.addr %s182, 8
      %s184 = scalar_lea.vmem %s3, %s183
      %s185 = sadd.s32 %s19, %s20
      %s186 = smul.u32 32, %s185
      %p187 = scmp.lt.s32.totalorder %s186, 63
      %s188 = scalar_select %p187, %s186, 63
      %s189 = smul.addr %s188, 4
      %s190 = scalar_lea.vmem %s0, %s189
      %s191 = sadd.s32 %s19, %s20
      %s192 = smul.u32 32, %s191
      %p193 = scmp.lt.s32.totalorder %s19, 1
      %s194 = scalar_select %p193, %s19, 1
      %s195 = smul.addr %s194, 8
      %s196 = scalar_lea.vmem %s2, %s195
      %p197 = scmp.lt.s32.totalorder %s19, 1
      %s198 = scalar_select %p197, %s19, 1
      %s199 = smul.addr %s198, 8
      %s200 = scalar_lea.vmem %s3, %s199
      %p202 = scmp.eq.s32.totalorder %s20, 0
      // Predicated region
      $region29: #{basic_conv_block.2} parent=27 // pred_check
        %p203 = pneg %p202
      $region30: #{basic_conv_block.2} parent=27 // pred_check_branch
        %205 = sbr.rel (%p203) target = $region32
      $region31: #{basic_conv_block.2} parent=27 // pred_region
        %206 = vst [vmem:[%s196] sm:$0xff] 0.0
        %207 = vst [vmem:[%s200] sm:$0xff] 0.0
      $region32: #{basic_conv_block.2} parent=27 // pred_fallthru
        _
      %v208 = vld [vmem:[%s190] sm:$0xf]
      %v209 = vld [vmem:[%s190 + $0x4] sm:$0xf]
      %v210 = vld [vmem:[%s190 + $0x8] sm:$0xf]
      %v211 = vld [vmem:[%s190 + $0xc] sm:$0xf]
      %v212 = vld [vmem:[%s190 + $0x10] sm:$0xf]
      %v213 = vld [vmem:[%s190 + $0x14] sm:$0xf]
      %v214 = vld [vmem:[%s190 + $0x18] sm:$0xf]
      %v215 = vld [vmem:[%s190 + $0x1c] sm:$0xf]
      %v216 = vld [vmem:[%s190 + $0x20] sm:$0xf]
      %v217 = vld [vmem:[%s190 + $0x24] sm:$0xf]
      %v218 = vld [vmem:[%s190 + $0x28] sm:$0xf]
      %v219 = vld [vmem:[%s190 + $0x2c] sm:$0xf]
      %v220 = vld [vmem:[%s190 + $0x30] sm:$0xf]
      %v221 = vld [vmem:[%s190 + $0x34] sm:$0xf]
      %v222 = vld [vmem:[%s190 + $0x38] sm:$0xf]
      %v223 = vld [vmem:[%s190 + $0x3c] sm:$0xf]
      %v224 = vld [vmem:[%s190 + $0x40] sm:$0xf]
      %v225 = vld [vmem:[%s190 + $0x44] sm:$0xf]
      %v226 = vld [vmem:[%s190 + $0x48] sm:$0xf]
      %v227 = vld [vmem:[%s190 + $0x4c] sm:$0xf]
      %v228 = vld [vmem:[%s190 + $0x50] sm:$0xf]
      %v229 = vld [vmem:[%s190 + $0x54] sm:$0xf]
      %v230 = vld [vmem:[%s190 + $0x58] sm:$0xf]
      %v231 = vld [vmem:[%s190 + $0x5c] sm:$0xf]
      %v232 = vld [vmem:[%s190 + $0x60] sm:$0xf]
      %v233 = vld [vmem:[%s190 + $0x64] sm:$0xf]
      %v234 = vld [vmem:[%s190 + $0x68] sm:$0xf]
      %v235 = vld [vmem:[%s190 + $0x6c] sm:$0xf]
      %v236 = vld [vmem:[%s190 + $0x70] sm:$0xf]
      %v237 = vld [vmem:[%s190 + $0x74] sm:$0xf]
      %v238 = vld [vmem:[%s190 + $0x78] sm:$0xf]
      %v239 = vld [vmem:[%s190 + $0x7c] sm:$0xf]
      %v240 = vld [vmem:[%s1] sm:$0xf]
      %v241 = vld [vmem:[%s1 + $0x4] sm:$0xf]
      %v242 = vld [vmem:[%s1 + $0x8] sm:$0xf]
      %v243 = vld [vmem:[%s1 + $0xc] sm:$0xf]
      %v244 = vld [vmem:[%s1 + $0x10] sm:$0xf]
      %v245 = vld [vmem:[%s1 + $0x14] sm:$0xf]
      %v246 = vld [vmem:[%s1 + $0x18] sm:$0xf]
      %v247 = vld [vmem:[%s1 + $0x1c] sm:$0xf]
      %v248 = vld [vmem:[%s1 + $0x20] sm:$0xf]
      %v249 = vld [vmem:[%s1 + $0x24] sm:$0xf]
      %v250 = vld [vmem:[%s1 + $0x28] sm:$0xf]
      %v251 = vld [vmem:[%s1 + $0x2c] sm:$0xf]
      %v252 = vld [vmem:[%s1 + $0x30] sm:$0xf]
      %v253 = vld [vmem:[%s1 + $0x34] sm:$0xf]
      %v254 = vld [vmem:[%s1 + $0x38] sm:$0xf]
      %v255 = vld [vmem:[%s1 + $0x3c] sm:$0xf]
      %v288 = vunpack.c.l.b16 %v208
      %v289 = vunpack.c.l.b16 %v209
      %v290 = vunpack.c.l.b16 %v210
      %v291 = vunpack.c.l.b16 %v211
      %v292 = vunpack.c.l.b16 %v212
      %v293 = vunpack.c.l.b16 %v213
      %v294 = vunpack.c.l.b16 %v214
      %v295 = vunpack.c.l.b16 %v215
      %v296 = vunpack.c.l.b16 %v216
      %v297 = vunpack.c.l.b16 %v217
      %v298 = vunpack.c.l.b16 %v218
      %v299 = vunpack.c.l.b16 %v219
      %v300 = vunpack.c.l.b16 %v220
      %v301 = vunpack.c.l.b16 %v221
      %v302 = vunpack.c.l.b16 %v222
      %v303 = vunpack.c.l.b16 %v223
      %v304 = vunpack.c.l.b16 %v224
      %v305 = vunpack.c.l.b16 %v225
      %v306 = vunpack.c.l.b16 %v226
      %v307 = vunpack.c.l.b16 %v227
      %v308 = vunpack.c.l.b16 %v228
      %v309 = vunpack.c.l.b16 %v229
      %v310 = vunpack.c.l.b16 %v230
      %v311 = vunpack.c.l.b16 %v231
      %v312 = vunpack.c.l.b16 %v232
      %v313 = vunpack.c.l.b16 %v233
      %v314 = vunpack.c.l.b16 %v234
      %v315 = vunpack.c.l.b16 %v235
      %v316 = vunpack.c.l.b16 %v236
      %v317 = vunpack.c.l.b16 %v237
      %v318 = vunpack.c.l.b16 %v238
      %v319 = vunpack.c.l.b16 %v239
      %v320 = vpack.c.b16 %v289, %v288
      %v321 = vpack.c.b16 %v291, %v290
      %v322 = vpack.c.b16 %v293, %v292
      %v323 = vpack.c.b16 %v295, %v294
      %v324 = vpack.c.b16 %v297, %v296
      %v325 = vpack.c.b16 %v299, %v298
      %v326 = vpack.c.b16 %v301, %v300
      %v327 = vpack.c.b16 %v303, %v302
      %v328 = vpack.c.b16 %v305, %v304
      %v329 = vpack.c.b16 %v307, %v306
      %v330 = vpack.c.b16 %v309, %v308
      %v331 = vpack.c.b16 %v311, %v310
      %v332 = vpack.c.b16 %v313, %v312
      %v333 = vpack.c.b16 %v315, %v314
      %v334 = vpack.c.b16 %v317, %v316
      %v335 = vpack.c.b16 %v319, %v318
      %v368 = vunpack.c.l.b16 %v240
      %v369 = vunpack.c.l.b16 %v241
      %v370 = vunpack.c.l.b16 %v242
      %v371 = vunpack.c.l.b16 %v243
      %v372 = vunpack.c.l.b16 %v244
      %v373 = vunpack.c.l.b16 %v245
      %v374 = vunpack.c.l.b16 %v246
      %v375 = vunpack.c.l.b16 %v247
      %v376 = vunpack.c.l.b16 %v248
      %v377 = vunpack.c.l.b16 %v249
      %v378 = vunpack.c.l.b16 %v250
      %v379 = vunpack.c.l.b16 %v251
      %v380 = vunpack.c.l.b16 %v252
      %v381 = vunpack.c.l.b16 %v253
      %v382 = vunpack.c.l.b16 %v254
      %v383 = vunpack.c.l.b16 %v255
      %v384 = vpack.c.b16 %v369, %v368
      %v385 = vpack.c.b16 %v371, %v370
      %v386 = vpack.c.b16 %v373, %v372
      %v387 = vpack.c.b16 %v375, %v374
      %v388 = vpack.c.b16 %v377, %v376
      %v389 = vpack.c.b16 %v379, %v378
      %v390 = vpack.c.b16 %v381, %v380
      %v391 = vpack.c.b16 %v383, %v382
      %400 = vmatprep.subr.bf16.mxu0 0
      %401 = vmatpush1.bf16.msra.mxu0 %v384
      %402 = vmatprep.subr.bf16.mxu0 0
      %403 = vmatpush1.bf16.msra.mxu0 %v385
      %404 = vmatprep.subr.bf16.mxu0 0
      %405 = vmatpush1.bf16.msra.mxu0 %v386
      %406 = vmatprep.subr.bf16.mxu0 0
      %407 = vmatpush1.bf16.msra.mxu0 %v387
      %408 = vmatprep.subr.bf16.mxu0 0
      %409 = vmatpush1.bf16.msra.mxu0 %v388
      %410 = vmatprep.subr.bf16.mxu0 0
      %411 = vmatpush1.bf16.msra.mxu0 %v389
      %412 = vmatprep.subr.bf16.mxu0 0
      %413 = vmatpush1.bf16.msra.mxu0 %v390
      %414 = vmatprep.subr.bf16.mxu0 0
      %415 = vmatpush1.bf16.msra.mxu0 %v391
      %416 = vmatprep.subr.bf16.mxu0 0
      %417 = vmatpush1.bf16.msra.mxu0 0
      %418 = vmatprep.subr.bf16.mxu0 0
      %419 = vmatpush1.bf16.msra.mxu0 0
      %420 = vmatprep.subr.bf16.mxu0 0
      %421 = vmatpush1.bf16.msra.mxu0 0
      %422 = vmatprep.subr.bf16.mxu0 0
      %423 = vmatpush1.bf16.msra.mxu0 0
      %424 = vmatprep.subr.bf16.mxu0 0
      %425 = vmatpush1.bf16.msra.mxu0 0
      %426 = vmatprep.subr.bf16.mxu0 0
      %427 = vmatpush1.bf16.msra.mxu0 0
      %428 = vmatprep.subr.bf16.mxu0 0
      %429 = vmatpush1.bf16.msra.mxu0 0
      %430 = vmatprep.subr.bf16.mxu0 0
      %431 = vmatpush1.bf16.msra.mxu0 0
      %432 = vmatprep.mubr.bf16.mxu0 0
      %433 = vmatmul.mubr.bf16.gmra.mrb[0].mxu0 %v320
      %v434 = vpop.f32.mrb[0].mxu0
      %v435 = vadd.f32 0.0, %v434
      %v436 = vpop.f32.mrb[0].mxu0
      %v437 = vpop.f32.mrb[0].mxu0
      %v438 = vadd.f32 0.0, %v437
      %v439 = vpop.f32.mrb[0].mxu0
      %440 = vmatprep.mubr.bf16.mxu0 0
      %441 = vmatmul.mubr.bf16.gmra.mrb[0].mxu0 %v321
      %v442 = vpop.f32.mrb[0].mxu0
      %v443 = vadd.f32 0.0, %v442
      %v444 = vpop.f32.mrb[0].mxu0
      %v445 = vpop.f32.mrb[0].mxu0
      %v446 = vadd.f32 0.0, %v445
      %v447 = vpop.f32.mrb[0].mxu0
      %448 = vmatprep.mubr.bf16.mxu0 0
      %449 = vmatmul.mubr.bf16.gmra.mrb[0].mxu0 %v322
      %v450 = vpop.f32.mrb[0].mxu0
      %v451 = vadd.f32 0.0, %v450
      %v452 = vpop.f32.mrb[0].mxu0
      %v453 = vpop.f32.mrb[0].mxu0
      %v454 = vadd.f32 0.0, %v453
      %v455 = vpop.f32.mrb[0].mxu0
      %456 = vmatprep.mubr.bf16.mxu0 0
      %457 = vmatmul.mubr.bf16.gmra.mrb[0].mxu0 %v323
      %v458 = vpop.f32.mrb[0].mxu0
      %v459 = vadd.f32 0.0, %v458
      %v460 = vpop.f32.mrb[0].mxu0
      %v461 = vpop.f32.mrb[0].mxu0
      %v462 = vadd.f32 0.0, %v461
      %v463 = vpop.f32.mrb[0].mxu0
      %464 = vmatprep.mubr.bf16.mxu0 0
      %465 = vmatmul.mubr.bf16.gmra.mrb[0].mxu0 %v324
      %v466 = vpop.f32.mrb[0].mxu0
      %v467 = vadd.f32 0.0, %v466
      %v468 = vpop.f32.mrb[0].mxu0
      %v469 = vpop.f32.mrb[0].mxu0
      %v470 = vadd.f32 0.0, %v469
      %v471 = vpop.f32.mrb[0].mxu0
      %472 = vmatprep.mubr.bf16.mxu0 0
      %473 = vmatmul.mubr.bf16.gmra.mrb[0].mxu0 %v325
      %v474 = vpop.f32.mrb[0].mxu0
      %v475 = vadd.f32 0.0, %v474
      %v476 = vpop.f32.mrb[0].mxu0
      %v477 = vpop.f32.mrb[0].mxu0
      %v478 = vadd.f32 0.0, %v477
      %v479 = vpop.f32.mrb[0].mxu0
      %480 = vmatprep.mubr.bf16.mxu0 0
      %481 = vmatmul.mubr.bf16.gmra.mrb[0].mxu0 %v326
      %v482 = vpop.f32.mrb[0].mxu0
      %v483 = vadd.f32 0.0, %v482
      %v484 = vpop.f32.mrb[0].mxu0
      %v485 = vpop.f32.mrb[0].mxu0
      %v486 = vadd.f32 0.0, %v485
      %v487 = vpop.f32.mrb[0].mxu0
      %488 = vmatprep.mubr.bf16.mxu0 0
      %489 = vmatmul.mubr.bf16.gmra.mrb[0].mxu0 %v327
      %v490 = vpop.f32.mrb[0].mxu0
      %v491 = vadd.f32 0.0, %v490
      %v492 = vpop.f32.mrb[0].mxu0
      %v493 = vpop.f32.mrb[0].mxu0
      %v494 = vadd.f32 0.0, %v493
      %v495 = vpop.f32.mrb[0].mxu0
      %496 = vmatprep.mubr.bf16.mxu0 0
      %497 = vmatmul.mubr.bf16.gmra.mrb[0].mxu0 %v328
      %v498 = vpop.f32.mrb[0].mxu0
      %v499 = vadd.f32 0.0, %v498
      %v500 = vpop.f32.mrb[0].mxu0
      %v501 = vpop.f32.mrb[0].mxu0
      %v502 = vadd.f32 0.0, %v501
      %v503 = vpop.f32.mrb[0].mxu0
      %504 = vmatprep.mubr.bf16.mxu0 0
      %505 = vmatmul.mubr.bf16.gmra.mrb[0].mxu0 %v329
      %v506 = vpop.f32.mrb[0].mxu0
      %v507 = vadd.f32 0.0, %v506
      %v508 = vpop.f32.mrb[0].mxu0
      %v509 = vpop.f32.mrb[0].mxu0
      %v510 = vadd.f32 0.0, %v509
      %v511 = vpop.f32.mrb[0].mxu0
      %512 = vmatprep.mubr.bf16.mxu0 0
      %513 = vmatmul.mubr.bf16.gmra.mrb[0].mxu0 %v330
      %v514 = vpop.f32.mrb[0].mxu0
      %v515 = vadd.f32 0.0, %v514
      %v516 = vpop.f32.mrb[0].mxu0
      %v517 = vpop.f32.mrb[0].mxu0
      %v518 = vadd.f32 0.0, %v517
      %v519 = vpop.f32.mrb[0].mxu0
      %520 = vmatprep.mubr.bf16.mxu0 0
      %521 = vmatmul.mubr.bf16.gmra.mrb[0].mxu0 %v331
      %v522 = vpop.f32.mrb[0].mxu0
      %v523 = vadd.f32 0.0, %v522
      %v524 = vpop.f32.mrb[0].mxu0
      %v525 = vpop.f32.mrb[0].mxu0
      %v526 = vadd.f32 0.0, %v525
      %v527 = vpop.f32.mrb[0].mxu0
      %528 = vmatprep.mubr.bf16.mxu0 0
      %529 = vmatmul.mubr.bf16.gmra.mrb[0].mxu0 %v332
      %v530 = vpop.f32.mrb[0].mxu0
      %v531 = vadd.f32 0.0, %v530
      %v532 = vpop.f32.mrb[0].mxu0
      %v533 = vpop.f32.mrb[0].mxu0
      %v534 = vadd.f32 0.0, %v533
      %v535 = vpop.f32.mrb[0].mxu0
      %536 = vmatprep.mubr.bf16.mxu0 0
      %537 = vmatmul.mubr.bf16.gmra.mrb[0].mxu0 %v333
      %v538 = vpop.f32.mrb[0].mxu0
      %v539 = vadd.f32 0.0, %v538
      %v540 = vpop.f32.mrb[0].mxu0
      %v541 = vpop.f32.mrb[0].mxu0
      %v542 = vadd.f32 0.0, %v541
      %v543 = vpop.f32.mrb[0].mxu0
      %544 = vmatprep.mubr.bf16.mxu0 0
      %545 = vmatmul.mubr.bf16.gmra.mrb[0].mxu0 %v334
      %v546 = vpop.f32.mrb[0].mxu0
      %v547 = vadd.f32 0.0, %v546
      %v548 = vpop.f32.mrb[0].mxu0
      %v549 = vpop.f32.mrb[0].mxu0
      %v550 = vadd.f32 0.0, %v549
      %v551 = vpop.f32.mrb[0].mxu0
      %552 = vmatprep.mubr.bf16.mxu0 0
      %553 = vmatmul.mubr.bf16.gmra.mrb[0].mxu0 %v335
      %v554 = vpop.f32.mrb[0].mxu0
      %v555 = vadd.f32 0.0, %v554
      %v556 = vpop.f32.mrb[0].mxu0
      %v557 = vpop.f32.mrb[0].mxu0
      %v558 = vadd.f32 0.0, %v557
      %v559 = vpop.f32.mrb[0].mxu0
      %560 = vdwg.mxu0
      %v561 = vld [vmem:[%s196] sm:$0xff]
      %v562 = vadd.f32 %v435, %v438
      %v563 = vadd.f32 %v562, %v443
      %v564 = vadd.f32 %v563, %v446
      %v565 = vadd.f32 %v564, %v451
      %v566 = vadd.f32 %v565, %v454
      %v567 = vadd.f32 %v566, %v459
      %v568 = vadd.f32 %v567, %v462
      %v569 = vadd.f32 %v568, %v467
      %v570 = vadd.f32 %v569, %v470
      %v571 = vadd.f32 %v570, %v475
      %v572 = vadd.f32 %v571, %v478
      %v573 = vadd.f32 %v572, %v483
      %v574 = vadd.f32 %v573, %v486
      %v575 = vadd.f32 %v574, %v491
      %v576 = vadd.f32 %v575, %v494
      %v577 = vadd.f32 %v576, %v499
      %v578 = vadd.f32 %v577, %v502
      %v579 = vadd.f32 %v578, %v507
      %v580 = vadd.f32 %v579, %v510
      %v581 = vadd.f32 %v580, %v515
      %v582 = vadd.f32 %v581, %v518
      %v583 = vadd.f32 %v582, %v523
      %v584 = vadd.f32 %v583, %v526
      %v585 = vadd.f32 %v584, %v531
      %v586 = vadd.f32 %v585, %v534
      %v587 = vadd.f32 %v586, %v539
      %v588 = vadd.f32 %v587, %v542
      %v589 = vadd.f32 %v588, %v547
      %v590 = vadd.f32 %v589, %v550
      %v591 = vadd.f32 %v590, %v555
      %v592 = vadd.f32 %v591, %v558
      %v593 = vadd.f32 %v561, %v592
      %594 = vst [vmem:[%s196] sm:$0xff] %v593
      %v595 = vld [vmem:[%s200] sm:$0xff]
      %v596 = vmul.f32 %v435, %v435
      %v597 = vmul.f32 %v438, %v438
      %v598 = vmul.f32 %v443, %v443
      %v599 = vmul.f32 %v446, %v446
      %v600 = vmul.f32 %v451, %v451
      %v601 = vmul.f32 %v454, %v454
      %v602 = vmul.f32 %v459, %v459
      %v603 = vmul.f32 %v462, %v462
      %v604 = vmul.f32 %v467, %v467
      %v605 = vmul.f32 %v470, %v470
      %v606 = vmul.f32 %v475, %v475
      %v607 = vmul.f32 %v478, %v478
      %v608 = vmul.f32 %v483, %v483
      %v609 = vmul.f32 %v486, %v486
      %v610 = vmul.f32 %v491, %v491
      %v611 = vmul.f32 %v494, %v494
      %v612 = vmul.f32 %v499, %v499
      %v613 = vmul.f32 %v502, %v502
      %v614 = vmul.f32 %v507, %v507
      %v615 = vmul.f32 %v510, %v510
      %v616 = vmul.f32 %v515, %v515
      %v617 = vmul.f32 %v518, %v518
      %v618 = vmul.f32 %v523, %v523
      %v619 = vmul.f32 %v526, %v526
      %v620 = vmul.f32 %v531, %v531
      %v621 = vmul.f32 %v534, %v534
      %v622 = vmul.f32 %v539, %v539
      %v623 = vmul.f32 %v542, %v542
      %v624 = vmul.f32 %v547, %v547
      %v625 = vmul.f32 %v550, %v550
      %v626 = vmul.f32 %v555, %v555
      %v627 = vmul.f32 %v558, %v558
      %v628 = vadd.f32 %v596, %v597
      %v629 = vadd.f32 %v628, %v598
      %v630 = vadd.f32 %v629, %v599
      %v631 = vadd.f32 %v630, %v600
      %v632 = vadd.f32 %v631, %v601
      %v633 = vadd.f32 %v632, %v602
      %v634 = vadd.f32 %v633, %v603
      %v635 = vadd.f32 %v634, %v604
      %v636 = vadd.f32 %v635, %v605
      %v637 = vadd.f32 %v636, %v606
      %v638 = vadd.f32 %v637, %v607
      %v639 = vadd.f32 %v638, %v608
      %v640 = vadd.f32 %v639, %v609
      %v641 = vadd.f32 %v640, %v610
      %v642 = vadd.f32 %v641, %v611
      %v643 = vadd.f32 %v642, %v612
      %v644 = vadd.f32 %v643, %v613
      %v645 = vadd.f32 %v644, %v614
      %v646 = vadd.f32 %v645, %v615
      %v647 = vadd.f32 %v646, %v616
      %v648 = vadd.f32 %v647, %v617
      %v649 = vadd.f32 %v648, %v618
      %v650 = vadd.f32 %v649, %v619
      %v651 = vadd.f32 %v650, %v620
      %v652 = vadd.f32 %v651, %v621
      %v653 = vadd.f32 %v652, %v622
      %v654 = vadd.f32 %v653, %v623
      %v655 = vadd.f32 %v654, %v624
      %v656 = vadd.f32 %v655, %v625
      %v657 = vadd.f32 %v656, %v626
      %v658 = vadd.f32 %v657, %v627
      %v659 = vadd.f32 %v595, %v658
      %660 = vst [vmem:[%s200] sm:$0xff] %v659
      %p661 = scmp.lt.s32.totalorder %s19, 1
      %s662 = scalar_select %p661, %s19, 1
      %s663 = smul.addr %s662, 8
      %s664 = scalar_lea.vmem %s2, %s663
      %p665 = scmp.lt.s32.totalorder %s19, 1
      %s666 = scalar_select %p665, %s19, 1
      %s667 = smul.addr %s666, 8
      %s668 = scalar_lea.vmem %s3, %s667
      // Predicated region
      $region33: #{basic_conv_block.2} parent=27 // pred_check
        %p669 = pneg %p94
      $region34: #{basic_conv_block.2} parent=27 // pred_check_branch
        %671 = sbr.rel (%p669) target = $region36
      $region35: #{basic_conv_block.2} parent=27 // pred_region
        _
      $region36: #{basic_conv_block.2} parent=27 // pred_fallthru
        _
      // Predicated region
      $region37: #{basic_conv_block.2} parent=27 // pred_check
        %p672 = pneg %p120
      $region38: #{basic_conv_block.2} parent=27 // pred_check_branch
        %674 = sbr.rel (%p672) target = $region40
      $region39: #{basic_conv_block.2} parent=27 // pred_region
        _
      $region40: #{basic_conv_block.2} parent=27 // pred_fallthru
        _
    $region28: #{basic_conv_block.2} parent=5 // pred_fallthru
      _
    %p675 = scmp.le.s32.totalorder 2, %s10
    // Predicated region
    $region41: #{basic_conv_block.2} parent=5 // pred_check
      %p676 = pneg %p675
    $region42: #{basic_conv_block.2} parent=5 // pred_check_branch
      %678 = sbr.rel (%p676) target = $region44
    $region43: #{basic_conv_block.2} parent=5 // pred_region
      %s679 = ssub.s32 %s10, 2
      // Predicated region
      $region45: #{basic_conv_block.2} parent=43 // pred_check
        %p680 = pneg %p100
      $region46: #{basic_conv_block.2} parent=43 // pred_check_branch
        %682 = sbr.rel (%p680) target = $region48
      $region47: #{basic_conv_block.2} parent=43 // pred_region
        %p683 = scmp.lt.s32.totalorder %s21, 1
        %s684 = scalar_select %p683, %s21, 1
        %s685 = smul.addr %s684, 8
        %s686 = scalar_lea.vmem %s2, %s685
      $region48: #{basic_conv_block.2} parent=43 // pred_fallthru
        _
      // Predicated region
      $region49: #{basic_conv_block.2} parent=43 // pred_check
        %p687 = pneg %p126
      $region50: #{basic_conv_block.2} parent=43 // pred_check_branch
        %689 = sbr.rel (%p687) target = $region52
      $region51: #{basic_conv_block.2} parent=43 // pred_region
        %p690 = scmp.lt.s32.totalorder %s21, 1
        %s691 = scalar_select %p690, %s21, 1
        %s692 = smul.addr %s691, 8
        %s693 = scalar_lea.vmem %s3, %s692
      $region52: #{basic_conv_block.2} parent=43 // pred_fallthru
        _
    $region44: #{basic_conv_block.2} parent=5 // pred_fallthru
      _
  $region6: #{basic_conv_block.2} parent=0 // loop_footer
    %s14 = sadd.s32 1, %s10
  $region7: #{basic_conv_block.2} parent=0 // loop_footer_branch
    %9 = sbr.rel target = $region3
  $region8: #{basic_conv_block.2} parent=0 // loop_exit
    _

// kernel: basic_conv_block.3
$region0: #{basic_conv_block.3}
  #allocation0 [shape = 'u32[]', space=smem, size = 0x4, offset = 0x4, fixed_abs, tag = 'smem constant byte address 0x4 - core index']
  #allocation1 [shape = 'u32[144,128]{1,0:T(1,128)}', space=vmem, size = 0x12000, scoped, tag = 'internal scratch']
  %s0 = inlined_call_operand.vmem [shape: bf16[512,128], index: 0, kind: input, shape index: {}]
  %s1 = inlined_call_operand.vmem [shape: bf16[128,128], index: 1, kind: input, shape index: {}]
  %s2 = inlined_call_operand.vmem [shape: f32[1,128], index: 2, kind: input, shape index: {}]
  %s3 = inlined_call_operand.vmem [shape: f32[1,128], index: 3, kind: input, shape index: {}]
  %s4 = inlined_call_operand.vmem [shape: bf16[512,128], index: 4, kind: output, shape index: {}]
  %s5 = sld [smem:[#allocation0]]
  $region49: #{basic_conv_block.3} parent=0
    _
  %s7 = ssub.s32 1, %s5
  %s8 = scalar_select 0, %s7, %s5
  loop: start=0, step=1, limit=4
  $region2: #{basic_conv_block.3} parent=0 // loop_pre_header
    _
  $region3: #{basic_conv_block.3} parent=0 // loop_header
    %s10 = sphi 0, %s14
    %p11 = scmp.ge.s32.totalorder %s10, 4
    %s20 = sphi 0, %s22
    %s23 = sphi 0, %s20
    %s24 = sphi 0, %s23
    %s40 = sphi 0, %s24
    %s44 = sphi 0, %s44
    %s46 = sphi 0, %s44
    %s47 = sphi 0, %s46
    %s61 = sphi 0, %s47
    %s65 = sphi 0, %s65
    %s67 = sphi 0, %s65
    %s68 = sphi 0, %s67
    %s82 = sphi 0, %s68
    %s86 = sphi 0, %s86
    %s88 = sphi 0, %s86
    %s89 = sphi 0, %s88
    %s103 = sphi 0, %s89
    %s109 = sphi 0, %s111
    %s112 = sphi 0, %s109
    %s113 = sphi 0, %s112
    %s129 = sphi 0, %s113
  $region4: #{basic_conv_block.3} parent=0 // loop_header_branch
    %13 = sbr.rel (%p11) target = $region8
  $region5: #{basic_conv_block.3} parent=0 // loop_body
    %s15 = ssub.s32 %s10, 1
    %s16 = ssub.s32 %s10, 2
    %s17 = sadd.s32 %s10, 1
    %s18 = ssub.s32 %s10, %s17
    %p19 = scmp.eq.s32.totalorder %s18, 0
    %s21 = sadd.s32 %s20, 1
    %s22 = scalar_select %p19, %s20, %s21
    %p25 = pneg %p19
    %p26 = scmp.eq.s32.totalorder %s10, 1
    %p27 = por %p25, %p26
    %p28 = scmp.ne.s32.totalorder %s20, %s23
    %p29 = scmp.eq.s32.totalorder %s10, 0
    %p30 = por %p28, %p29
    %p31 = scmp.ne.s32.totalorder %s20, %s23
    %p32 = scmp.eq.s32.totalorder %s15, 1
    %p33 = por %p31, %p32
    %p34 = scmp.ne.s32.totalorder %s23, %s24
    %p35 = scmp.eq.s32.totalorder %s15, 0
    %p36 = por %p34, %p35
    %p37 = scmp.ne.s32.totalorder %s23, %s24
    %p38 = scmp.eq.s32.totalorder %s16, 1
    %p39 = por %p37, %p38
    %p41 = scmp.ne.s32.totalorder %s24, %s40
    %p42 = scmp.eq.s32.totalorder %s16, 0
    %p43 = por %p41, %p42
    %s45 = sadd.s32 %s44, 1
    %p48 = scmp.eq.s32.totalorder %s10, 1
    %p49 = scmp.ne.s32.totalorder %s44, %s46
    %p50 = scmp.eq.s32.totalorder %s10, 0
    %p51 = por %p49, %p50
    %p52 = scmp.ne.s32.totalorder %s44, %s46
    %p53 = scmp.eq.s32.totalorder %s15, 1
    %p54 = por %p52, %p53
    %p55 = scmp.ne.s32.totalorder %s46, %s47
    %p56 = scmp.eq.s32.totalorder %s15, 0
    %p57 = por %p55, %p56
    %p58 = scmp.ne.s32.totalorder %s46, %s47
    %p59 = scmp.eq.s32.totalorder %s16, 1
    %p60 = por %p58, %p59
    %p62 = scmp.ne.s32.totalorder %s47, %s61
    %p63 = scmp.eq.s32.totalorder %s16, 0
    %p64 = por %p62, %p63
    %s66 = sadd.s32 %s65, 1
    %p69 = scmp.eq.s32.totalorder %s10, 1
    %p70 = scmp.ne.s32.totalorder %s65, %s67
    %p71 = scmp.eq.s32.totalorder %s10, 0
    %p72 = por %p70, %p71
    %p73 = scmp.ne.s32.totalorder %s65, %s67
    %p74 = scmp.eq.s32.totalorder %s15, 1
    %p75 = por %p73, %p74
    %p76 = scmp.ne.s32.totalorder %s67, %s68
    %p77 = scmp.eq.s32.totalorder %s15, 0
    %p78 = por %p76, %p77
    %p79 = scmp.ne.s32.totalorder %s67, %s68
    %p80 = scmp.eq.s32.totalorder %s16, 1
    %p81 = por %p79, %p80
    %p83 = scmp.ne.s32.totalorder %s68, %s82
    %p84 = scmp.eq.s32.totalorder %s16, 0
    %p85 = por %p83, %p84
    %s87 = sadd.s32 %s86, 1
    %p90 = scmp.eq.s32.totalorder %s10, 1
    %p91 = scmp.ne.s32.totalorder %s86, %s88
    %p92 = scmp.eq.s32.totalorder %s10, 0
    %p93 = por %p91, %p92
    %p94 = scmp.ne.s32.totalorder %s86, %s88
    %p95 = scmp.eq.s32.totalorder %s15, 1
    %p96 = por %p94, %p95
    %p97 = scmp.ne.s32.totalorder %s88, %s89
    %p98 = scmp.eq.s32.totalorder %s15, 0
    %p99 = por %p97, %p98
    %p100 = scmp.ne.s32.totalorder %s88, %s89
    %p101 = scmp.eq.s32.totalorder %s16, 1
    %p102 = por %p100, %p101
    %p104 = scmp.ne.s32.totalorder %s89, %s103
    %p105 = scmp.eq.s32.totalorder %s16, 0
    %p106 = por %p104, %p105
    %s107 = ssub.s32 %s10, %s17
    %p108 = scmp.eq.s32.totalorder %s107, 0
    %s110 = sadd.s32 %s109, 1
    %s111 = scalar_select %p108, %s109, %s110
    %p114 = pneg %p108
    %p115 = scmp.eq.s32.totalorder %s10, 1
    %p116 = por %p114, %p115
    %p117 = scmp.ne.s32.totalorder %s109, %s112
    %p118 = scmp.eq.s32.totalorder %s10, 0
    %p119 = por %p117, %p118
    %p120 = scmp.ne.s32.totalorder %s109, %s112
    %p121 = scmp.eq.s32.totalorder %s15, 1
    %p122 = por %p120, %p121
    %p123 = scmp.ne.s32.totalorder %s112, %s113
    %p124 = scmp.eq.s32.totalorder %s15, 0
    %p125 = por %p123, %p124
    %p126 = scmp.ne.s32.totalorder %s112, %s113
    %p127 = scmp.eq.s32.totalorder %s16, 1
    %p128 = por %p126, %p127
    %p130 = scmp.ne.s32.totalorder %s113, %s129
    %p131 = scmp.eq.s32.totalorder %s16, 0
    %p132 = por %p130, %p131
    %p133 = scmp.le.s32.totalorder 1, %s10
    %p134 = scmp.lt.s32.totalorder %s10, 3
    %p135 = pnand %p133, %p134
    %p136 = pneg %p135
    // Predicated region
    $region9: #{basic_conv_block.3} parent=5 // pred_check
      _
    $region10: #{basic_conv_block.3} parent=5 // pred_check_branch
      %138 = sbr.rel (%p135) target = $region12
    $region11: #{basic_conv_block.3} parent=5 // pred_region
      %s139 = ssub.s32 %s10, 1
      // Predicated region
      $region13: #{basic_conv_block.3} parent=11 // pred_check
        %p140 = pneg %p57
      $region14: #{basic_conv_block.3} parent=11 // pred_check_branch
        %142 = sbr.rel (%p140) target = $region16
      $region15: #{basic_conv_block.3} parent=11 // pred_region
        _
      $region16: #{basic_conv_block.3} parent=11 // pred_fallthru
        _
      // Predicated region
      $region17: #{basic_conv_block.3} parent=11 // pred_check
        %p143 = pneg %p78
      $region18: #{basic_conv_block.3} parent=11 // pred_check_branch
        %145 = sbr.rel (%p143) target = $region20
      $region19: #{basic_conv_block.3} parent=11 // pred_region
        _
      $region20: #{basic_conv_block.3} parent=11 // pred_fallthru
        _
      // Predicated region
      $region21: #{basic_conv_block.3} parent=11 // pred_check
        %p146 = pneg %p99
      $region22: #{basic_conv_block.3} parent=11 // pred_check_branch
        %148 = sbr.rel (%p146) target = $region24
      $region23: #{basic_conv_block.3} parent=11 // pred_region
        _
      $region24: #{basic_conv_block.3} parent=11 // pred_fallthru
        _
    $region12: #{basic_conv_block.3} parent=5 // pred_fallthru
      _
    %p149 = scmp.lt.s32.totalorder %s10, 2
    // Predicated region
    $region25: #{basic_conv_block.3} parent=5 // pred_check
      %p150 = pneg %p149
    $region26: #{basic_conv_block.3} parent=5 // pred_check_branch
      %152 = sbr.rel (%p150) target = $region28
    $region27: #{basic_conv_block.3} parent=5 // pred_region
      // Predicated region
      $region29: #{basic_conv_block.3} parent=27 // pred_check
        %p153 = pneg %p30
      $region30: #{basic_conv_block.3} parent=27 // pred_check_branch
        %155 = sbr.rel (%p153) target = $region32
      $region31: #{basic_conv_block.3} parent=27 // pred_region
        %s156 = smul.u32 32, %s10
        %p157 = scmp.lt.s32.totalorder %s156, 63
        %s158 = scalar_select %p157, %s156, 63
        %s159 = smul.addr %s158, 4
        %s160 = scalar_lea.vmem %s0, %s159
        %s161 = smul.u32 32, %s10
      $region32: #{basic_conv_block.3} parent=27 // pred_fallthru
        _
    $region28: #{basic_conv_block.3} parent=5 // pred_fallthru
      _
    %p162 = scmp.le.s32.totalorder 1, %s10
    %p163 = scmp.lt.s32.totalorder %s10, 3
    %p164 = pnand %p162, %p163
    %p165 = pneg %p164
    // Predicated region
    $region33: #{basic_conv_block.3} parent=5 // pred_check
      _
    $region34: #{basic_conv_block.3} parent=5 // pred_check_branch
      %167 = sbr.rel (%p164) target = $region36
    $region35: #{basic_conv_block.3} parent=5 // pred_region
      %s168 = ssub.s32 %s10, 1
      %s169 = smul.u32 32, %s15
      %p170 = scmp.lt.s32.totalorder %s169, 63
      %s171 = scalar_select %p170, %s169, 63
      %s172 = smul.addr %s171, 4
      %s173 = scalar_lea.vmem %s0, %s172
      %p174 = pneg %p36
      %p175 = pneg %p33
      %p176 = pneg %p57
      %p177 = pneg %p54
      %p178 = pneg %p78
      %p179 = pneg %p75
      %p180 = pneg %p99
      %p181 = pneg %p96
      %p182 = pneg %p125
      %p183 = pneg %p122
      %s184 = smul.u32 32, %s15
      %p185 = scmp.lt.s32.totalorder %s184, 63
      %s186 = scalar_select %p185, %s184, 63
      %s187 = smul.addr %s186, 4
      %s188 = scalar_lea.vmem %s4, %s187
      %s189 = smul.u32 32, %s15
      %p190 = scmp.lt.s32.totalorder %s189, 63
      %s191 = scalar_select %p190, %s189, 63
      %s192 = smul.addr %s191, 4
      %s193 = scalar_lea.vmem %s0, %s192
      %s194 = smul.u32 32, %s15
      %s195 = smul.u32 32, %s15
      %p196 = scmp.lt.s32.totalorder %s195, 63
      %s197 = scalar_select %p196, %s195, 63
      %s198 = smul.addr %s197, 4
      %s199 = scalar_lea.vmem %s4, %s198
      %s200 = smul.u32 32, %s15
      %v202 = vld [vmem:[%s193] sm:$0xf]
      %v203 = vld [vmem:[%s193 + $0x4] sm:$0xf]
      %v204 = vld [vmem:[%s193 + $0x8] sm:$0xf]
      %v205 = vld [vmem:[%s193 + $0xc] sm:$0xf]
      %v206 = vld [vmem:[%s193 + $0x10] sm:$0xf]
      %v207 = vld [vmem:[%s193 + $0x14] sm:$0xf]
      %v208 = vld [vmem:[%s193 + $0x18] sm:$0xf]
      %v209 = vld [vmem:[%s193 + $0x1c] sm:$0xf]
      %v210 = vld [vmem:[%s193 + $0x20] sm:$0xf]
      %v211 = vld [vmem:[%s193 + $0x24] sm:$0xf]
      %v212 = vld [vmem:[%s193 + $0x28] sm:$0xf]
      %v213 = vld [vmem:[%s193 + $0x2c] sm:$0xf]
      %v214 = vld [vmem:[%s193 + $0x30] sm:$0xf]
      %v215 = vld [vmem:[%s193 + $0x34] sm:$0xf]
      %v216 = vld [vmem:[%s193 + $0x38] sm:$0xf]
      %v217 = vld [vmem:[%s193 + $0x3c] sm:$0xf]
      %v218 = vld [vmem:[%s193 + $0x40] sm:$0xf]
      %v219 = vld [vmem:[%s193 + $0x44] sm:$0xf]
      %v220 = vld [vmem:[%s193 + $0x48] sm:$0xf]
      %v221 = vld [vmem:[%s193 + $0x4c] sm:$0xf]
      %v222 = vld [vmem:[%s193 + $0x50] sm:$0xf]
      %v223 = vld [vmem:[%s193 + $0x54] sm:$0xf]
      %v224 = vld [vmem:[%s193 + $0x58] sm:$0xf]
      %v225 = vld [vmem:[%s193 + $0x5c] sm:$0xf]
      %v226 = vld [vmem:[%s193 + $0x60] sm:$0xf]
      %v227 = vld [vmem:[%s193 + $0x64] sm:$0xf]
      %v228 = vld [vmem:[%s193 + $0x68] sm:$0xf]
      %v229 = vld [vmem:[%s193 + $0x6c] sm:$0xf]
      %v230 = vld [vmem:[%s193 + $0x70] sm:$0xf]
      %v231 = vld [vmem:[%s193 + $0x74] sm:$0xf]
      %v232 = vld [vmem:[%s193 + $0x78] sm:$0xf]
      %v233 = vld [vmem:[%s193 + $0x7c] sm:$0xf]
      %v234 = vld [vmem:[%s1] sm:$0xf]
      %v235 = vld [vmem:[%s1 + $0x4] sm:$0xf]
      %v236 = vld [vmem:[%s1 + $0x8] sm:$0xf]
      %v237 = vld [vmem:[%s1 + $0xc] sm:$0xf]
      %v238 = vld [vmem:[%s1 + $0x10] sm:$0xf]
      %v239 = vld [vmem:[%s1 + $0x14] sm:$0xf]
      %v240 = vld [vmem:[%s1 + $0x18] sm:$0xf]
      %v241 = vld [vmem:[%s1 + $0x1c] sm:$0xf]
      %v242 = vld [vmem:[%s1 + $0x20] sm:$0xf]
      %v243 = vld [vmem:[%s1 + $0x24] sm:$0xf]
      %v244 = vld [vmem:[%s1 + $0x28] sm:$0xf]
      %v245 = vld [vmem:[%s1 + $0x2c] sm:$0xf]
      %v246 = vld [vmem:[%s1 + $0x30] sm:$0xf]
      %v247 = vld [vmem:[%s1 + $0x34] sm:$0xf]
      %v248 = vld [vmem:[%s1 + $0x38] sm:$0xf]
      %v249 = vld [vmem:[%s1 + $0x3c] sm:$0xf]
      %v282 = vunpack.c.l.b16 %v202
      %v283 = vunpack.c.l.b16 %v203
      %v284 = vunpack.c.l.b16 %v204
      %v285 = vunpack.c.l.b16 %v205
      %v286 = vunpack.c.l.b16 %v206
      %v287 = vunpack.c.l.b16 %v207
      %v288 = vunpack.c.l.b16 %v208
      %v289 = vunpack.c.l.b16 %v209
      %v290 = vunpack.c.l.b16 %v210
      %v291 = vunpack.c.l.b16 %v211
      %v292 = vunpack.c.l.b16 %v212
      %v293 = vunpack.c.l.b16 %v213
      %v294 = vunpack.c.l.b16 %v214
      %v295 = vunpack.c.l.b16 %v215
      %v296 = vunpack.c.l.b16 %v216
      %v297 = vunpack.c.l.b16 %v217
      %v298 = vunpack.c.l.b16 %v218
      %v299 = vunpack.c.l.b16 %v219
      %v300 = vunpack.c.l.b16 %v220
      %v301 = vunpack.c.l.b16 %v221
      %v302 = vunpack.c.l.b16 %v222
      %v303 = vunpack.c.l.b16 %v223
      %v304 = vunpack.c.l.b16 %v224
      %v305 = vunpack.c.l.b16 %v225
      %v306 = vunpack.c.l.b16 %v226
      %v307 = vunpack.c.l.b16 %v227
      %v308 = vunpack.c.l.b16 %v228
      %v309 = vunpack.c.l.b16 %v229
      %v310 = vunpack.c.l.b16 %v230
      %v311 = vunpack.c.l.b16 %v231
      %v312 = vunpack.c.l.b16 %v232
      %v313 = vunpack.c.l.b16 %v233
      %v314 = vpack.c.b16 %v283, %v282
      %v315 = vpack.c.b16 %v285, %v284
      %v316 = vpack.c.b16 %v287, %v286
      %v317 = vpack.c.b16 %v289, %v288
      %v318 = vpack.c.b16 %v291, %v290
      %v319 = vpack.c.b16 %v293, %v292
      %v320 = vpack.c.b16 %v295, %v294
      %v321 = vpack.c.b16 %v297, %v296
      %v322 = vpack.c.b16 %v299, %v298
      %v323 = vpack.c.b16 %v301, %v300
      %v324 = vpack.c.b16 %v303, %v302
      %v325 = vpack.c.b16 %v305, %v304
      %v326 = vpack.c.b16 %v307, %v306
      %v327 = vpack.c.b16 %v309, %v308
      %v328 = vpack.c.b16 %v311, %v310
      %v329 = vpack.c.b16 %v313, %v312
      %v362 = vunpack.c.l.b16 %v234
      %v363 = vunpack.c.l.b16 %v235
      %v364 = vunpack.c.l.b16 %v236
      %v365 = vunpack.c.l.b16 %v237
      %v366 = vunpack.c.l.b16 %v238
      %v367 = vunpack.c.l.b16 %v239
      %v368 = vunpack.c.l.b16 %v240
      %v369 = vunpack.c.l.b16 %v241
      %v370 = vunpack.c.l.b16 %v242
      %v371 = vunpack.c.l.b16 %v243
      %v372 = vunpack.c.l.b16 %v244
      %v373 = vunpack.c.l.b16 %v245
      %v374 = vunpack.c.l.b16 %v246
      %v375 = vunpack.c.l.b16 %v247
      %v376 = vunpack.c.l.b16 %v248
      %v377 = vunpack.c.l.b16 %v249
      %v378 = vpack.c.b16 %v363, %v362
      %v379 = vpack.c.b16 %v365, %v364
      %v380 = vpack.c.b16 %v367, %v366
      %v381 = vpack.c.b16 %v369, %v368
      %v382 = vpack.c.b16 %v371, %v370
      %v383 = vpack.c.b16 %v373, %v372
      %v384 = vpack.c.b16 %v375, %v374
      %v385 = vpack.c.b16 %v377, %v376
      %394 = vmatprep.subr.bf16.mxu0 0
      %395 = vmatpush1.bf16.msra.mxu0 %v378
      %396 = vmatprep.subr.bf16.mxu0 0
      %397 = vmatpush1.bf16.msra.mxu0 %v379
      %398 = vmatprep.subr.bf16.mxu0 0
      %399 = vmatpush1.bf16.msra.mxu0 %v380
      %400 = vmatprep.subr.bf16.mxu0 0
      %401 = vmatpush1.bf16.msra.mxu0 %v381
      %402 = vmatprep.subr.bf16.mxu0 0
      %403 = vmatpush1.bf16.msra.mxu0 %v382
      %404 = vmatprep.subr.bf16.mxu0 0
      %405 = vmatpush1.bf16.msra.mxu0 %v383
      %406 = vmatprep.subr.bf16.mxu0 0
      %407 = vmatpush1.bf16.msra.mxu0 %v384
      %408 = vmatprep.subr.bf16.mxu0 0
      %409 = vmatpush1.bf16.msra.mxu0 %v385
      %410 = vmatprep.subr.bf16.mxu0 0
      %411 = vmatpush1.bf16.msra.mxu0 0
      %412 = vmatprep.subr.bf16.mxu0 0
      %413 = vmatpush1.bf16.msra.mxu0 0
      %414 = vmatprep.subr.bf16.mxu0 0
      %415 = vmatpush1.bf16.msra.mxu0 0
      %416 = vmatprep.subr.bf16.mxu0 0
      %417 = vmatpush1.bf16.msra.mxu0 0
      %418 = vmatprep.subr.bf16.mxu0 0
      %419 = vmatpush1.bf16.msra.mxu0 0
      %420 = vmatprep.subr.bf16.mxu0 0
      %421 = vmatpush1.bf16.msra.mxu0 0
      %422 = vmatprep.subr.bf16.mxu0 0
      %423 = vmatpush1.bf16.msra.mxu0 0
      %424 = vmatprep.subr.bf16.mxu0 0
      %425 = vmatpush1.bf16.msra.mxu0 0
      %426 = vmatprep.mubr.bf16.mxu0 0
      %427 = vmatmul.mubr.bf16.gmra.mrb[0].mxu0 %v314
      %v428 = vpop.f32.mrb[0].mxu0
      %v429 = vadd.f32 0.0, %v428
      %v430 = vpop.f32.mrb[0].mxu0
      %v431 = vpop.f32.mrb[0].mxu0
      %v432 = vadd.f32 0.0, %v431
      %v433 = vpop.f32.mrb[0].mxu0
      %434 = vmatprep.mubr.bf16.mxu0 0
      %435 = vmatmul.mubr.bf16.gmra.mrb[0].mxu0 %v315
      %v436 = vpop.f32.mrb[0].mxu0
      %v437 = vadd.f32 0.0, %v436
      %v438 = vpop.f32.mrb[0].mxu0
      %v439 = vpop.f32.mrb[0].mxu0
      %v440 = vadd.f32 0.0, %v439
      %v441 = vpop.f32.mrb[0].mxu0
      %442 = vmatprep.mubr.bf16.mxu0 0
      %443 = vmatmul.mubr.bf16.gmra.mrb[0].mxu0 %v316
      %v444 = vpop.f32.mrb[0].mxu0
      %v445 = vadd.f32 0.0, %v444
      %v446 = vpop.f32.mrb[0].mxu0
      %v447 = vpop.f32.mrb[0].mxu0
      %v448 = vadd.f32 0.0, %v447
      %v449 = vpop.f32.mrb[0].mxu0
      %450 = vmatprep.mubr.bf16.mxu0 0
      %451 = vmatmul.mubr.bf16.gmra.mrb[0].mxu0 %v317
      %v452 = vpop.f32.mrb[0].mxu0
      %v453 = vadd.f32 0.0, %v452
      %v454 = vpop.f32.mrb[0].mxu0
      %v455 = vpop.f32.mrb[0].mxu0
      %v456 = vadd.f32 0.0, %v455
      %v457 = vpop.f32.mrb[0].mxu0
      %458 = vmatprep.mubr.bf16.mxu0 0
      %459 = vmatmul.mubr.bf16.gmra.mrb[0].mxu0 %v318
      %v460 = vpop.f32.mrb[0].mxu0
      %v461 = vadd.f32 0.0, %v460
      %v462 = vpop.f32.mrb[0].mxu0
      %v463 = vpop.f32.mrb[0].mxu0
      %v464 = vadd.f32 0.0, %v463
      %v465 = vpop.f32.mrb[0].mxu0
      %466 = vmatprep.mubr.bf16.mxu0 0
      %467 = vmatmul.mubr.bf16.gmra.mrb[0].mxu0 %v319
      %v468 = vpop.f32.mrb[0].mxu0
      %v469 = vadd.f32 0.0, %v468
      %v470 = vpop.f32.mrb[0].mxu0
      %v471 = vpop.f32.mrb[0].mxu0
      %v472 = vadd.f32 0.0, %v471
      %v473 = vpop.f32.mrb[0].mxu0
      %474 = vmatprep.mubr.bf16.mxu0 0
      %475 = vmatmul.mubr.bf16.gmra.mrb[0].mxu0 %v320
      %v476 = vpop.f32.mrb[0].mxu0
      %v477 = vadd.f32 0.0, %v476
      %v478 = vpop.f32.mrb[0].mxu0
      %v479 = vpop.f32.mrb[0].mxu0
      %v480 = vadd.f32 0.0, %v479
      %v481 = vpop.f32.mrb[0].mxu0
      %482 = vmatprep.mubr.bf16.mxu0 0
      %483 = vmatmul.mubr.bf16.gmra.mrb[0].mxu0 %v321
      %v484 = vpop.f32.mrb[0].mxu0
      %v485 = vadd.f32 0.0, %v484
      %v486 = vpop.f32.mrb[0].mxu0
      %v487 = vpop.f32.mrb[0].mxu0
      %v488 = vadd.f32 0.0, %v487
      %v489 = vpop.f32.mrb[0].mxu0
      %490 = vmatprep.mubr.bf16.mxu0 0
      %491 = vmatmul.mubr.bf16.gmra.mrb[0].mxu0 %v322
      %v492 = vpop.f32.mrb[0].mxu0
      %v493 = vadd.f32 0.0, %v492
      %v494 = vpop.f32.mrb[0].mxu0
      %v495 = vpop.f32.mrb[0].mxu0
      %v496 = vadd.f32 0.0, %v495
      %v497 = vpop.f32.mrb[0].mxu0
      %498 = vmatprep.mubr.bf16.mxu0 0
      %499 = vmatmul.mubr.bf16.gmra.mrb[0].mxu0 %v323
      %v500 = vpop.f32.mrb[0].mxu0
      %v501 = vadd.f32 0.0, %v500
      %v502 = vpop.f32.mrb[0].mxu0
      %v503 = vpop.f32.mrb[0].mxu0
      %v504 = vadd.f32 0.0, %v503
      %v505 = vpop.f32.mrb[0].mxu0
      %506 = vmatprep.mubr.bf16.mxu0 0
      %507 = vmatmul.mubr.bf16.gmra.mrb[0].mxu0 %v324
      %v508 = vpop.f32.mrb[0].mxu0
      %v509 = vadd.f32 0.0, %v508
      %v510 = vpop.f32.mrb[0].mxu0
      %v511 = vpop.f32.mrb[0].mxu0
      %v512 = vadd.f32 0.0, %v511
      %v513 = vpop.f32.mrb[0].mxu0
      %514 = vmatprep.mubr.bf16.mxu0 0
      %515 = vmatmul.mubr.bf16.gmra.mrb[0].mxu0 %v325
      %v516 = vpop.f32.mrb[0].mxu0
      %v517 = vadd.f32 0.0, %v516
      %v518 = vpop.f32.mrb[0].mxu0
      %v519 = vpop.f32.mrb[0].mxu0
      %v520 = vadd.f32 0.0, %v519
      %v521 = vpop.f32.mrb[0].mxu0
      %522 = vmatprep.mubr.bf16.mxu0 0
      %523 = vmatmul.mubr.bf16.gmra.mrb[0].mxu0 %v326
      %v524 = vpop.f32.mrb[0].mxu0
      %v525 = vadd.f32 0.0, %v524
      %v526 = vpop.f32.mrb[0].mxu0
      %v527 = vpop.f32.mrb[0].mxu0
      %v528 = vadd.f32 0.0, %v527
      %v529 = vpop.f32.mrb[0].mxu0
      %530 = vmatprep.mubr.bf16.mxu0 0
      %531 = vmatmul.mubr.bf16.gmra.mrb[0].mxu0 %v327
      %v532 = vpop.f32.mrb[0].mxu0
      %v533 = vadd.f32 0.0, %v532
      %v534 = vpop.f32.mrb[0].mxu0
      %v535 = vpop.f32.mrb[0].mxu0
      %v536 = vadd.f32 0.0, %v535
      %v537 = vpop.f32.mrb[0].mxu0
      %538 = vmatprep.mubr.bf16.mxu0 0
      %539 = vmatmul.mubr.bf16.gmra.mrb[0].mxu0 %v328
      %v540 = vpop.f32.mrb[0].mxu0
      %v541 = vadd.f32 0.0, %v540
      %v542 = vpop.f32.mrb[0].mxu0
      %v543 = vpop.f32.mrb[0].mxu0
      %v544 = vadd.f32 0.0, %v543
      %v545 = vpop.f32.mrb[0].mxu0
      %546 = vmatprep.mubr.bf16.mxu0 0
      %547 = vmatmul.mubr.bf16.gmra.mrb[0].mxu0 %v329
      %v548 = vpop.f32.mrb[0].mxu0
      %v549 = vadd.f32 0.0, %v548
      %v550 = vpop.f32.mrb[0].mxu0
      %v551 = vpop.f32.mrb[0].mxu0
      %v552 = vadd.f32 0.0, %v551
      %v553 = vpop.f32.mrb[0].mxu0
      %554 = vdwg.mxu0
      %v555 = vld [vmem:[%s2] sm:$0x1]
      %v557 = vlaneseq
      %v558 = vshrl.u32 %v557, 7
      %v559 = vsub.s32 0, %v558
      %v560 = vrot.slane %v555, %v559
      %v562 = vmul.f32 %v429, %v560
      %v563 = vmul.f32 %v432, %v560
      %v564 = vmul.f32 %v437, %v560
      %v565 = vmul.f32 %v440, %v560
      %v566 = vmul.f32 %v445, %v560
      %v567 = vmul.f32 %v448, %v560
      %v568 = vmul.f32 %v453, %v560
      %v569 = vmul.f32 %v456, %v560
      %v570 = vmul.f32 %v461, %v560
      %v571 = vmul.f32 %v464, %v560
      %v572 = vmul.f32 %v469, %v560
      %v573 = vmul.f32 %v472, %v560
      %v574 = vmul.f32 %v477, %v560
      %v575 = vmul.f32 %v480, %v560
      %v576 = vmul.f32 %v485, %v560
      %v577 = vmul.f32 %v488, %v560
      %v578 = vmul.f32 %v493, %v560
      %v579 = vmul.f32 %v496, %v560
      %v580 = vmul.f32 %v501, %v560
      %v581 = vmul.f32 %v504, %v560
      %v582 = vmul.f32 %v509, %v560
      %v583 = vmul.f32 %v512, %v560
      %v584 = vmul.f32 %v517, %v560
      %v585 = vmul.f32 %v520, %v560
      %v586 = vmul.f32 %v525, %v560
      %v587 = vmul.f32 %v528, %v560
      %v588 = vmul.f32 %v533, %v560
      %v589 = vmul.f32 %v536, %v560
      %v590 = vmul.f32 %v541, %v560
      %v591 = vmul.f32 %v544, %v560
      %v592 = vmul.f32 %v549, %v560
      %v593 = vmul.f32 %v552, %v560
      %v594 = vld [vmem:[%s3] sm:$0x1]
      %v596 = vlaneseq
      %v597 = vshrl.u32 %v596, 7
      %v598 = vsub.s32 0, %v597
      %v599 = vrot.slane %v594, %v598
      %v601 = vadd.f32 %v562, %v599
      %v602 = vadd.f32 %v563, %v599
      %v603 = vadd.f32 %v564, %v599
      %v604 = vadd.f32 %v565, %v599
      %v605 = vadd.f32 %v566, %v599
      %v606 = vadd.f32 %v567, %v599
      %v607 = vadd.f32 %v568, %v599
      %v608 = vadd.f32 %v569, %v599
      %v609 = vadd.f32 %v570, %v599
      %v610 = vadd.f32 %v571, %v599
      %v611 = vadd.f32 %v572, %v599
      %v612 = vadd.f32 %v573, %v599
      %v613 = vadd.f32 %v574, %v599
      %v614 = vadd.f32 %v575, %v599
      %v615 = vadd.f32 %v576, %v599
      %v616 = vadd.f32 %v577, %v599
      %v617 = vadd.f32 %v578, %v599
      %v618 = vadd.f32 %v579, %v599
      %v619 = vadd.f32 %v580, %v599
      %v620 = vadd.f32 %v581, %v599
      %v621 = vadd.f32 %v582, %v599
      %v622 = vadd.f32 %v583, %v599
      %v623 = vadd.f32 %v584, %v599
      %v624 = vadd.f32 %v585, %v599
      %v625 = vadd.f32 %v586, %v599
      %v626 = vadd.f32 %v587, %v599
      %v627 = vadd.f32 %v588, %v599
      %v628 = vadd.f32 %v589, %v599
      %v629 = vadd.f32 %v590, %v599
      %v630 = vadd.f32 %v591, %v599
      %v631 = vadd.f32 %v592, %v599
      %v632 = vadd.f32 %v593, %v599
      %v633 = vmax.f32 %v601, 0.0
      %v634 = vmax.f32 %v602, 0.0
      %v635 = vmax.f32 %v603, 0.0
      %v636 = vmax.f32 %v604, 0.0
      %v637 = vmax.f32 %v605, 0.0
      %v638 = vmax.f32 %v606, 0.0
      %v639 = vmax.f32 %v607, 0.0
      %v640 = vmax.f32 %v608, 0.0
      %v641 = vmax.f32 %v609, 0.0
      %v642 = vmax.f32 %v610, 0.0
      %v643 = vmax.f32 %v611, 0.0
      %v644 = vmax.f32 %v612, 0.0
      %v645 = vmax.f32 %v613, 0.0
      %v646 = vmax.f32 %v614, 0.0
      %v647 = vmax.f32 %v615, 0.0
      %v648 = vmax.f32 %v616, 0.0
      %v649 = vmax.f32 %v617, 0.0
      %v650 = vmax.f32 %v618, 0.0
      %v651 = vmax.f32 %v619, 0.0
      %v652 = vmax.f32 %v620, 0.0
      %v653 = vmax.f32 %v621, 0.0
      %v654 = vmax.f32 %v622, 0.0
      %v655 = vmax.f32 %v623, 0.0
      %v656 = vmax.f32 %v624, 0.0
      %v657 = vmax.f32 %v625, 0.0
      %v658 = vmax.f32 %v626, 0.0
      %v659 = vmax.f32 %v627, 0.0
      %v660 = vmax.f32 %v628, 0.0
      %v661 = vmax.f32 %v629, 0.0
      %v662 = vmax.f32 %v630, 0.0
      %v663 = vmax.f32 %v631, 0.0
      %v664 = vmax.f32 %v632, 0.0
      %v665 = vpack.c.bf16 %v634, %v633
      %v666 = vpack.c.bf16 %v636, %v635
      %v667 = vpack.c.bf16 %v638, %v637
      %v668 = vpack.c.bf16 %v640, %v639
      %v669 = vpack.c.bf16 %v642, %v641
      %v670 = vpack.c.bf16 %v644, %v643
      %v671 = vpack.c.bf16 %v646, %v645
      %v672 = vpack.c.bf16 %v648, %v647
      %v673 = vpack.c.bf16 %v650, %v649
      %v674 = vpack.c.bf16 %v652, %v651
      %v675 = vpack.c.bf16 %v654, %v653
      %v676 = vpack.c.bf16 %v656, %v655
      %v677 = vpack.c.bf16 %v658, %v657
      %v678 = vpack.c.bf16 %v660, %v659
      %v679 = vpack.c.bf16 %v662, %v661
      %v680 = vpack.c.bf16 %v664, %v663
      %v697 = vunpack.c.l.b16 %v665
      %v698 = vunpack.c.h.b16 %v665
      %v699 = vunpack.c.l.b16 %v666
      %v700 = vunpack.c.h.b16 %v666
      %v701 = vunpack.c.l.b16 %v667
      %v702 = vunpack.c.h.b16 %v667
      %v703 = vunpack.c.l.b16 %v668
      %v704 = vunpack.c.h.b16 %v668
      %v705 = vunpack.c.l.b16 %v669
      %v706 = vunpack.c.h.b16 %v669
      %v707 = vunpack.c.l.b16 %v670
      %v708 = vunpack.c.h.b16 %v670
      %v709 = vunpack.c.l.b16 %v671
      %v710 = vunpack.c.h.b16 %v671
      %v711 = vunpack.c.l.b16 %v672
      %v712 = vunpack.c.h.b16 %v672
      %v713 = vunpack.c.l.b16 %v673
      %v714 = vunpack.c.h.b16 %v673
      %v715 = vunpack.c.l.b16 %v674
      %v716 = vunpack.c.h.b16 %v674
      %v717 = vunpack.c.l.b16 %v675
      %v718 = vunpack.c.h.b16 %v675
      %v719 = vunpack.c.l.b16 %v676
      %v720 = vunpack.c.h.b16 %v676
      %v721 = vunpack.c.l.b16 %v677
      %v722 = vunpack.c.h.b16 %v677
      %v723 = vunpack.c.l.b16 %v678
      %v724 = vunpack.c.h.b16 %v678
      %v725 = vunpack.c.l.b16 %v679
      %v726 = vunpack.c.h.b16 %v679
      %v727 = vunpack.c.l.b16 %v680
      %v728 = vunpack.c.h.b16 %v680
      %v729 = vpack.c.b16 %v697, %v697
      %v730 = vpack.c.b16 %v698, %v698
      %v731 = vpack.c.b16 %v699, %v699
      %v732 = vpack.c.b16 %v700, %v700
      %v733 = vpack.c.b16 %v701, %v701
      %v734 = vpack.c.b16 %v702, %v702
      %v735 = vpack.c.b16 %v703, %v703
      %v736 = vpack.c.b16 %v704, %v704
      %v737 = vpack.c.b16 %v705, %v705
      %v738 = vpack.c.b16 %v706, %v706
      %v739 = vpack.c.b16 %v707, %v707
      %v740 = vpack.c.b16 %v708, %v708
      %v741 = vpack.c.b16 %v709, %v709
      %v742 = vpack.c.b16 %v710, %v710
      %v743 = vpack.c.b16 %v711, %v711
      %v744 = vpack.c.b16 %v712, %v712
      %v745 = vpack.c.b16 %v713, %v713
      %v746 = vpack.c.b16 %v714, %v714
      %v747 = vpack.c.b16 %v715, %v715
      %v748 = vpack.c.b16 %v716, %v716
      %v749 = vpack.c.b16 %v717, %v717
      %v750 = vpack.c.b16 %v718, %v718
      %v751 = vpack.c.b16 %v719, %v719
      %v752 = vpack.c.b16 %v720, %v720
      %v753 = vpack.c.b16 %v721, %v721
      %v754 = vpack.c.b16 %v722, %v722
      %v755 = vpack.c.b16 %v723, %v723
      %v756 = vpack.c.b16 %v724, %v724
      %v757 = vpack.c.b16 %v725, %v725
      %v758 = vpack.c.b16 %v726, %v726
      %v759 = vpack.c.b16 %v727, %v727
      %v760 = vpack.c.b16 %v728, %v728
      %793 = vst [vmem:[%s199] sm:$0xf] %v729
      %794 = vst [vmem:[%s199 + $0x4] sm:$0xf] %v730
      %795 = vst [vmem:[%s199 + $0x8] sm:$0xf] %v731
      %796 = vst [vmem:[%s199 + $0xc] sm:$0xf] %v732
      %797 = vst [vmem:[%s199 + $0x10] sm:$0xf] %v733
      %798 = vst [vmem:[%s199 + $0x14] sm:$0xf] %v734
      %799 = vst [vmem:[%s199 + $0x18] sm:$0xf] %v735
      %800 = vst [vmem:[%s199 + $0x1c] sm:$0xf] %v736
      %801 = vst [vmem:[%s199 + $0x20] sm:$0xf] %v737
      %802 = vst [vmem:[%s199 + $0x24] sm:$0xf] %v738
      %803 = vst [vmem:[%s199 + $0x28] sm:$0xf] %v739
      %804 = vst [vmem:[%s199 + $0x2c] sm:$0xf] %v740
      %805 = vst [vmem:[%s199 + $0x30] sm:$0xf] %v741
      %806 = vst [vmem:[%s199 + $0x34] sm:$0xf] %v742
      %807 = vst [vmem:[%s199 + $0x38] sm:$0xf] %v743
      %808 = vst [vmem:[%s199 + $0x3c] sm:$0xf] %v744
      %809 = vst [vmem:[%s199 + $0x40] sm:$0xf] %v745
      %810 = vst [vmem:[%s199 + $0x44] sm:$0xf] %v746
      %811 = vst [vmem:[%s199 + $0x48] sm:$0xf] %v747
      %812 = vst [vmem:[%s199 + $0x4c] sm:$0xf] %v748
      %813 = vst [vmem:[%s199 + $0x50] sm:$0xf] %v749
      %814 = vst [vmem:[%s199 + $0x54] sm:$0xf] %v750
      %815 = vst [vmem:[%s199 + $0x58] sm:$0xf] %v751
      %816 = vst [vmem:[%s199 + $0x5c] sm:$0xf] %v752
      %817 = vst [vmem:[%s199 + $0x60] sm:$0xf] %v753
      %818 = vst [vmem:[%s199 + $0x64] sm:$0xf] %v754
      %819 = vst [vmem:[%s199 + $0x68] sm:$0xf] %v755
      %820 = vst [vmem:[%s199 + $0x6c] sm:$0xf] %v756
      %821 = vst [vmem:[%s199 + $0x70] sm:$0xf] %v757
      %822 = vst [vmem:[%s199 + $0x74] sm:$0xf] %v758
      %823 = vst [vmem:[%s199 + $0x78] sm:$0xf] %v759
      %824 = vst [vmem:[%s199 + $0x7c] sm:$0xf] %v760
      %s825 = smul.u32 32, %s15
      %p826 = scmp.lt.s32.totalorder %s825, 63
      %s827 = scalar_select %p826, %s825, 63
      %s828 = smul.addr %s827, 4
      %s829 = scalar_lea.vmem %s4, %s828
      // Predicated region
      $region37: #{basic_conv_block.3} parent=35 // pred_check
        %p830 = pneg %p122
      $region38: #{basic_conv_block.3} parent=35 // pred_check_branch
        %832 = sbr.rel (%p830) target = $region40
      $region39: #{basic_conv_block.3} parent=35 // pred_region
        %s833 = smul.u32 32, %s15
      $region40: #{basic_conv_block.3} parent=35 // pred_fallthru
        _
    $region36: #{basic_conv_block.3} parent=5 // pred_fallthru
      _
    %p834 = scmp.le.s32.totalorder 2, %s10
    // Predicated region
    $region41: #{basic_conv_block.3} parent=5 // pred_check
      %p835 = pneg %p834
    $region42: #{basic_conv_block.3} parent=5 // pred_check_branch
      %837 = sbr.rel (%p835) target = $region44
    $region43: #{basic_conv_block.3} parent=5 // pred_region
      %s838 = ssub.s32 %s10, 2
      // Predicated region
      $region45: #{basic_conv_block.3} parent=43 // pred_check
        %p839 = pneg %p128
      $region46: #{basic_conv_block.3} parent=43 // pred_check_branch
        %841 = sbr.rel (%p839) target = $region48
      $region47: #{basic_conv_block.3} parent=43 // pred_region
        %s842 = smul.u32 32, %s16
        %p843 = scmp.lt.s32.totalorder %s842, 63
        %s844 = scalar_select %p843, %s842, 63
        %s845 = smul.addr %s844, 4
        %s846 = scalar_lea.vmem %s4, %s845
      $region48: #{basic_conv_block.3} parent=43 // pred_fallthru
        _
    $region44: #{basic_conv_block.3} parent=5 // pred_fallthru
      _
  $region6: #{basic_conv_block.3} parent=0 // loop_footer
    %s14 = sadd.s32 1, %s10
  $region7: #{basic_conv_block.3} parent=0 // loop_footer_branch
    %9 = sbr.rel target = $region3
  $region8: #{basic_conv_block.3} parent=0 // loop_exit
    _

</llo_original>
